<compile_context>
chip_gen: v7x
topology: tpu7x:2x2x1
jax: 0.10.0
libtpu: 0.0.40
codegen_flags: <defaults>
</compile_context>

<pallas_src>
import functools
import math

import jax
import jax.numpy as jnp
from jax.experimental import pallas as pl
from jax.experimental.pallas import tpu as pltpu


def _round_up(v, m):
    return (v + m - 1) // m * m


# ------------------------------------------------------------------
# Kernel 1: fused transformer stack
#   grid = (num_seq // F_TILE, num_blocks).  The F_TILE-frame activation tile
#   stays resident in the output VMEM block across the inner (block) axis;
#   stacked per-block bf16 weights stream in via double-buffered BlockSpecs.
# ------------------------------------------------------------------

# packed "small" rows: 0 ln1_g, 1 ln1_b, 2 ln2_g, 3 ln2_b, 4 proj_b, 5 fc2_b
_STACK_WEIGHTS = ("small", "qkv_w", "qkv_b", "proj_w", "fc1_w", "fc1_b", "fc2_w")


def _stack_kernel(x_ref, small_ref, qkv_w_ref, qkv_b_ref, proj_w_ref,
                  fc1_w_ref, fc1_b_ref, fc2_w_ref, o_ref, mask_ref,
                  *, f_tile, seq, valid_seq, num_heads, eps):
    l = pl.program_id(1)

    # First block of this frame tile: prime the resident output block and
    # (if the sequence is padded) build the additive key mask once.
    @pl.when(l == 0)
    def _():
        o_ref[...] = x_ref[...]
        if valid_seq < seq:                                   # static branch
            col = jax.lax.broadcasted_iota(jnp.int32, (seq, seq), 1)
            mask_ref[...] = jnp.where(col < valid_seq, 0.0, -1e9).astype(
                jnp.float32)

    x = o_ref[...]                                            # (rows, D) f32
    rows, d = x.shape
    dh = d // num_heads
    scale = 1.0 / math.sqrt(dh)

    small = small_ref[0]                                      # (8, D) f32
    ln1_g, ln1_b = small[0:1], small[1:2]
    ln2_g, ln2_b = small[2:3], small[3:4]
    proj_b, fc2_b = small[4:5], small[5:6]

    def _ln(z, g, b):
        mu = jnp.mean(z, axis=-1, keepdims=True)
        var = jnp.mean(jnp.square(z - mu), axis=-1, keepdims=True)
        return (z - mu) * jax.lax.rsqrt(var + eps) * g + b

    # ---- multi-head self-attention (per-frame, batched over F_TILE frames) ----
    h = _ln(x, ln1_g, ln1_b)
    qkv = jnp.dot(h.astype(jnp.bfloat16), qkv_w_ref[0],
                  preferred_element_type=jnp.float32) + qkv_b_ref[0]   # (rows, 3D)
    q3 = qkv[:, 0 * d:1 * d].reshape(f_tile, seq, d)
    k3 = qkv[:, 1 * d:2 * d].reshape(f_tile, seq, d)
    v3 = qkv[:, 2 * d:3 * d].reshape(f_tile, seq, d)

    ctx_heads = []
    for hh in range(num_heads):          # static unroll; heads are lane slices
        lo = hh * dh
        qh = q3[:, :, lo:lo + dh].astype(jnp.bfloat16)
        kh = k3[:, :, lo:lo + dh].astype(jnp.bfloat16)
        vh = v3[:, :, lo:lo + dh].astype(jnp.bfloat16)
        s = jnp.einsum("fqd,fkd->fqk", qh, kh,
                       preferred_element_type=jnp.float32) * scale
        if valid_seq < seq:                                   # static branch
            s = s + mask_ref[...][None, :, :]
        s = s - jnp.max(s, axis=-1, keepdims=True)
        p = jnp.exp(s)
        p = p * pl.reciprocal(jnp.sum(p, axis=-1, keepdims=True), approx=True)
        ctx_heads.append(jnp.einsum("fqk,fkd->fqd", p.astype(jnp.bfloat16), vh,
                                    preferred_element_type=jnp.float32))
    ctx = jnp.concatenate(ctx_heads, axis=-1).reshape(rows, d)
    # Single fused output projection: one (rows, D) @ (D, D) MXU matmul.
    attn = jnp.dot(ctx.astype(jnp.bfloat16), proj_w_ref[0],
                   preferred_element_type=jnp.float32) + proj_b
    x = x + attn

    # ---- MLP ----
    h2 = _ln(x, ln2_g, ln2_b)
    y = jnp.dot(h2.astype(jnp.bfloat16), fc1_w_ref[0],
                preferred_element_type=jnp.float32) + fc1_b_ref[0]
    # TODO(synk): PyTorch nn.GELU defaults to exact erf; tanh approximation here.
    y = jax.nn.gelu(y, approximate=True)
    y = jnp.dot(y.astype(jnp.bfloat16), fc2_w_ref[0],
                preferred_element_type=jnp.float32) + fc2_b

    o_ref[...] = x + y


def run_stack(x, weights, *, seq, valid_seq, num_heads, eps=1e-5,
              max_f_tile=8, max_tile_rows=512):
    """Run a whole stack of transformer blocks in ONE pallas_call.

    x: (num_seq * seq, D) f32 — one padded sequence per `seq` rows.
    weights: dict of stacked per-block tensors, leading dim = num_blocks.
    """
    m, d = x.shape
    num_seq = m // seq
    num_blocks = weights["qkv_w"].shape[0]
    hidden = weights["fc1_w"].shape[-1]

    # Largest divisor of num_seq that keeps the frame tile within budget.
    # Bigger F_TILE => fewer weight re-streams and a fuller MXU M dimension.
    f_tile = 1
    for f in range(1, num_seq + 1):
        if num_seq % f == 0 and f <= max_f_tile and f * seq <= max_tile_rows:
            f_tile = f
    rows = f_tile * seq

    def _wspec(arr):
        zeros = (0,) * (arr.ndim - 1)
        return pl.BlockSpec((1,) + tuple(arr.shape[1:]),
                            lambda fi, li, _z=zeros: (li,) + _z)

    in_specs = [pl.BlockSpec((rows, d), lambda fi, li: (fi, 0))]
    in_specs += [_wspec(weights[name]) for name in _STACK_WEIGHTS]

    # VMEM budget: double-buffered per-block weights + resident activation
    # (in/out) + f32 intermediates.  Only raise the scoped limit when needed
    # (smallest default is 16 MiB on v5e); cap at 64 MiB so the same kernel is
    # safe on v7x (64 MiB physical VMEM per TensorCore).  TODO(synk): a
    # v6e-only variant could keep ALL block weights VMEM-resident for shallow
    # stacks; omitted to keep one code path across generations.
    wbytes = sum(int(math.prod(weights[n].shape[1:])) * weights[n].dtype.itemsize
                 for n in _STACK_WEIGHTS)
    act_bytes = rows * d * 4
    inter_bytes = rows * (3 * d + hidden + d) * 4
    est = 2 * wbytes + 4 * act_bytes + 2 * inter_bytes
    cp_kwargs = dict(dimension_semantics=("parallel", "arbitrary"))
    vmem_limit = int(min(64 << 20, 2 * est))
    if vmem_limit > (16 << 20):
        cp_kwargs["vmem_limit_bytes"] = vmem_limit

    return pl.pallas_call(
        functools.partial(_stack_kernel, f_tile=f_tile, seq=seq,
                          valid_seq=valid_seq, num_heads=num_heads, eps=eps),
        grid=(num_seq // f_tile, num_blocks),
        out_shape=jax.ShapeDtypeStruct((m, d), jnp.float32),
        in_specs=in_specs,
        out_specs=pl.BlockSpec((rows, d), lambda fi, li: (fi, 0)),
        scratch_shapes=[pltpu.VMEM((seq, seq), jnp.float32)],   # key mask
        input_output_aliases={0: 0},
        compiler_params=pltpu.CompilerParams(**cp_kwargs),
    )(x, *[weights[name] for name in _STACK_WEIGHTS])


# ------------------------------------------------------------------
# Kernel 2: matmul + bias (patch embedding), row-tiled, K lane-padded
# ------------------------------------------------------------------

def _matmul_bias_kernel(x_ref, w_ref, b_ref, o_ref):
    o_ref[...] = jnp.dot(x_ref[...], w_ref[...],
                         preferred_element_type=jnp.float32) + b_ref[...]


def _pick_row_tile(m):
    for c in (512, 256, 128, 64, 32, 16, 8):
        if m % c == 0:
            return c
    return m


def matmul_bias(x, w, b):
    m, k = x.shape
    n = w.shape[1]
    tm = _pick_row_tile(m)
    return pl.pallas_call(
        _matmul_bias_kernel,
        grid=(m // tm,),
        out_shape=jax.ShapeDtypeStruct((m, n), jnp.float32),
        in_specs=[pl.BlockSpec((tm, k), lambda i: (i, 0)),
                  pl.BlockSpec((k, n), lambda i: (0, 0)),
                  pl.BlockSpec((1, n), lambda i: (0, 0))],
        out_specs=pl.BlockSpec((tm, n), lambda i: (i, 0)),
        compiler_params=pltpu.CompilerParams(dimension_semantics=("parallel",)),
    )(x, w, b)


# ------------------------------------------------------------------
# Kernel 3: temporal mean pool + LayerNorm + feature head (fused)
# ------------------------------------------------------------------

def _pool_head_kernel(x_ref, g_ref, b_ref, w_ref, hb_ref, o_ref, *, valid_t, eps):
    x = x_ref[...]                                            # (T_pad, D) f32
    row = jax.lax.broadcasted_iota(jnp.int32, x.shape, 0)
    pooled = jnp.sum(jnp.where(row < valid_t, x, 0.0),
                     axis=0, keepdims=True) * (1.0 / valid_t)  # (1, D)
    mu = jnp.mean(pooled, axis=-1, keepdims=True)
    var = jnp.mean(jnp.square(pooled - mu), axis=-1, keepdims=True)
    h = (pooled - mu) * jax.lax.rsqrt(var + eps) * g_ref[...] + b_ref[...]
    o_ref[...] = jnp.dot(h.astype(jnp.bfloat16), w_ref[...],
                         preferred_element_type=jnp.float32) + hb_ref[...]


def pool_head(x, g, b, w, hb, *, batch, t_pad, valid_t, eps=1e-5):
    d = x.shape[1]
    nc = w.shape[1]
    return pl.pallas_call(
        functools.partial(_pool_head_kernel, valid_t=valid_t, eps=eps),
        grid=(batch,),
        out_shape=jax.ShapeDtypeStruct((batch, nc), jnp.float32),
        in_specs=[pl.BlockSpec((t_pad, d), lambda i: (i, 0)),
                  pl.BlockSpec((1, d), lambda i: (0, 0)),
                  pl.BlockSpec((1, d), lambda i: (0, 0)),
                  pl.BlockSpec((d, nc), lambda i: (0, 0)),
                  pl.BlockSpec((1, nc), lambda i: (0, 0))],
        out_specs=pl.BlockSpec((1, nc), lambda i: (i, 0)),
        compiler_params=pltpu.CompilerParams(dimension_semantics=("parallel",)),
    )(x, g, b, w, hb)


# ------------------------------------------------------------------
# TemporalViT forward built from the three kernels
# ------------------------------------------------------------------

def _patch_embed(frames, params, cfg):
    """frames: (F, C, H, W) -> per-frame patch tokens (F, N, D)."""
    F_, C, H, W = frames.shape
    P = cfg["patch_size"]
    D = cfg["embed_dim"]
    Hp, Wp = H // P, W // P
    N = Hp * Wp
    K = C * P * P
    K_pad = params["patch_w"].shape[0]                 # lane-padded at init
    patches = frames.reshape(F_, C, Hp, P, Wp, P).transpose(0, 2, 4, 1, 3, 5)
    patches = patches.reshape(F_ * N, K)
    patches = jnp.pad(patches, ((0, 0), (0, K_pad - K)))
    m = patches.shape[0]
    m_pad = _round_up(m, 8)
    patches = jnp.pad(patches, ((0, m_pad - m), (0, 0))).astype(jnp.bfloat16)
    tok = matmul_bias(patches, params["patch_w"], params["patch_b"])[:m]
    return tok.reshape(F_, N, D)


def spatial_frame_features(params, frames, *, cfg):
    """frames: (F, C, H, W) -> per-frame CLS features (F, D)."""
    F_ = frames.shape[0]
    D = cfg["embed_dim"]
    P = cfg["patch_size"]
    N = (frames.shape[2] // P) * (frames.shape[3] // P)
    S = N + 1
    S_pad = _round_up(S, 8)

    tok = _patch_embed(frames, params, cfg)                             # (F, N, D)
    cls = jnp.broadcast_to(params["cls_token"], (F_, 1, D))
    xs = jnp.concatenate([cls, tok], axis=1) + params["pos_spatial"]    # (F, S, D)
    xs = jnp.pad(xs, ((0, 0), (0, S_pad - S), (0, 0))).reshape(F_ * S_pad, D)
    xs = run_stack(xs, params["spatial"], seq=S_pad, valid_seq=S,
                   num_heads=cfg["num_heads"])
    return xs.reshape(F_, S_pad, D)[:, 0, :]                            # CLS rows


def temporal_head_forward(params, frame_feat, *, cfg):
    """frame_feat: (B, T, D) cached per-frame CLS features -> (B, num_classes)."""
    B, T, D = frame_feat.shape
    T_pad = _round_up(T, 8)
    xt = frame_feat + params["pos_temporal"]
    xt = jnp.pad(xt, ((0, 0), (0, T_pad - T), (0, 0))).reshape(B * T_pad, D)
    xt = run_stack(xt, params["temporal"], seq=T_pad, valid_seq=T,
                   num_heads=cfg["num_heads"])
    return pool_head(xt, params["norm_g"], params["norm_b"],
                     params["head_w"], params["head_b"],
                     batch=B, t_pad=T_pad, valid_t=T)


def temporal_vit_forward(params, x, *, cfg):
    """Full batched forward. x: (B, T, C, H, W) NCHW frames."""
    B, T, C, H, W = x.shape
    feats = spatial_frame_features(params, x.reshape(B * T, C, H, W), cfg=cfg)
    return temporal_head_forward(params, feats.reshape(B, T, -1), cfg=cfg)


def vit_incremental_step(params, feat_buffer, obs_frame, *, cfg):
    """One env step: spatial stack on the single NEW frame only, temporal stack
    + head on the cached per-frame CLS features."""
    new_feat = spatial_frame_features(params, obs_frame[None], cfg=cfg)   # (1, D)
    feat_buffer = jnp.concatenate([feat_buffer[1:], new_feat], axis=0)    # (T, D)
    feats = temporal_head_forward(params, feat_buffer[None], cfg=cfg)
    return feats, feat_buffer


# ------------------------------------------------------------------
# Deterministic parameter init (synthetic weights, no checkpoint load)
# ------------------------------------------------------------------

def _init_stack(key, num_blocks, D, hidden, num_heads):
    ks = jax.random.split(key, 4)
    s = 0.02
    bf = jnp.bfloat16
    small = jnp.zeros((num_blocks, 8, D), jnp.float32)
    small = small.at[:, 0, :].set(1.0)            # ln1 gamma
    small = small.at[:, 2, :].set(1.0)            # ln2 gamma
    return {
        "small": small,                           # rows: ln1_g,ln1_b,ln2_g,ln2_b,proj_b,fc2_b,pad,pad
        "qkv_w": (s * jax.random.normal(ks[0], (num_blocks, D, 3 * D))).astype(bf),
        "qkv_b": jnp.zeros((num_blocks, 1, 3 * D), jnp.float32),
        "proj_w": (s * jax.random.normal(ks[1], (num_blocks, D, D))).astype(bf),
        "fc1_w": (s * jax.random.normal(ks[2], (num_blocks, D, hidden))).astype(bf),
        "fc1_b": jnp.zeros((num_blocks, 1, hidden), jnp.float32),
        "fc2_w": (s * jax.random.normal(ks[3], (num_blocks, hidden, D))).astype(bf),
    }


def init_params(key, cfg):
    C, P, D = cfg["in_channels"], cfg["patch_size"], cfg["embed_dim"]
    H, W = cfg["img_size"]
    N = (H // P) * (W // P)
    S = N + 1
    T = cfg["frame_history"]
    hidden = int(D * cfg["mlp_ratio"])
    nc = cfg["num_classes"]
    K = C * P * P
    K_pad = _round_up(K, 128)                     # lane-align the contraction dim
    ks = jax.random.split(key, 7)
    s = 0.02
    patch_w = s * jax.random.normal(ks[0], (K, D))
    patch_w = jnp.pad(patch_w, ((0, K_pad - K), (0, 0))).astype(jnp.bfloat16)
    return {
        "patch_w": patch_w,
        "patch_b": jnp.zeros((1, D), jnp.float32),
        "cls_token": s * jax.random.normal(ks[1], (1, 1, D)),
        "pos_spatial": s * jax.random.normal(ks[2], (1, S, D)),
        "pos_temporal": s * jax.random.normal(ks[3], (1, T, D)),
        "norm_g": jnp.ones((1, D), jnp.float32),
        "norm_b": jnp.zeros((1, D), jnp.float32),
        "head_w": (s * jax.random.normal(ks[4], (D, nc))).astype(jnp.bfloat16),
        "head_b": jnp.zeros((1, nc), jnp.float32),
        "spatial": _init_stack(ks[5], cfg["num_spatial_blocks"], D, hidden, cfg["num_heads"]),
        "temporal": _init_stack(ks[6], cfg["num_temporal_blocks"], D, hidden, cfg["num_heads"]),
    }


# ------------------------------------------------------------------
# ViTFeatureWrapper: device-side CLS-feature ring buffer + incremental step
# ------------------------------------------------------------------

class ViTFeatureWrapper:
    def __init__(self, cfg, param_key):
        self.cfg = cfg
        self.img_size = cfg["img_size"]
        self.frame_history = cfg["frame_history"]
        self.params = init_params(param_key, cfg)
        self._frame_feat = jax.jit(functools.partial(spatial_frame_features, cfg=cfg))
        self._step = jax.jit(functools.partial(vit_incremental_step, cfg=cfg))
        self.reset_buffer()

    def reset_buffer(self):
        # The PyTorch buffer holds zero FRAMES; cache the equivalent per-frame
        # CLS feature of a zero frame so the incremental path matches exactly.
        zero = jnp.zeros((self.cfg["in_channels"],
                          self.img_size[0], self.img_size[1]), jnp.float32)
        feat0 = self._frame_feat(self.params, zero[None])          # (1, D)
        self.buffer = jnp.tile(feat0, (self.frame_history, 1))     # (T, D)

    # TODO(synk): process_observation (torchvision resize/antialias, /255) is
    # host-side preprocessing and is not reimplemented here.

    def forward(self, obs_frame):
        """obs_frame: (C, H, W) float32. Returns (1, num_classes) features."""
        feats, self.buffer = self._step(self.params, self.buffer, obs_frame)
        return feats


# ------------------------------------------------------------------

if __name__ == "__main__":
    cfg = dict(
        img_size=(28, 28),       # small stand-in for (84, 84); multiple of patch_size
        patch_size=14,
        in_channels=3,
        num_classes=32,          # small stand-in for 512
        embed_dim=32,            # small stand-in for 512
        num_heads=4,
        mlp_ratio=2.0,
        num_spatial_blocks=3,
        num_temporal_blocks=3,
        frame_history=4,         # small stand-in for 32
    )

    key = jax.random.PRNGKey(0)
    k_param, k_obs = jax.random.split(key)

    wrapper = ViTFeatureWrapper(cfg, k_param)
    obs_frame = jax.random.uniform(
        k_obs, (cfg["in_channels"], cfg["img_size"][0], cfg["img_size"][1]),
        dtype=jnp.float32)

    feats = None
    for _ in range(cfg["frame_history"]):        # fill the ring buffer
        feats = wrapper.forward(obs_frame)
    feats = jax.block_until_ready(feats)

    assert feats.shape == (1, cfg["num_classes"]), feats.shape
    assert feats.dtype == jnp.float32
    assert bool(jnp.all(jnp.isfinite(feats)))

    # Parity check: incremental CLS-cached path == full batched forward
    # (this also exercises the F_TILE>1 frame-batched spatial stack).
    full_fn = jax.jit(functools.partial(temporal_vit_forward, cfg=cfg))
    stacked = jnp.broadcast_to(
        obs_frame, (cfg["frame_history"],) + obs_frame.shape)[None]
    feats_full = jax.block_until_ready(full_fn(wrapper.params, stacked))
    max_diff = float(jnp.max(jnp.abs(feats - feats_full)))
    assert bool(jnp.allclose(feats, feats_full, rtol=1e-2, atol=1e-3)), max_diff

    print("KERNEL_OK")
</pallas_src>

<mosaic_0001>
module attributes {stable_mosaic.version = 11 : i64} {
  func.func @_matmul_bias_kernel(%arg0: i32, %arg1: memref<8x640xbf16, #tpu.memory_space<vmem>>, %arg2: memref<640x32xbf16, #tpu.memory_space<vmem>>, %arg3: memref<1x32xf32, #tpu.memory_space<vmem>>, %arg4: memref<8x32xf32, #tpu.memory_space<vmem>>) attributes {dimension_semantics = [#tpu.dimension_semantics<parallel>], iteration_bounds = array<i64: 1>, scalar_prefetch = 0 : i64, scratch_operands = 0 : i64, tpu.core_type = #tpu.core_type<tc>, window_params = [{transform_indices = @transform_0, window_bounds = array<i64: 8, 640>}, {pipeline_mode = #tpu.pipeline_mode<synchronous>, transform_indices = @transform_1, window_bounds = array<i64: 640, 32>}, {pipeline_mode = #tpu.pipeline_mode<synchronous>, transform_indices = @transform_2, window_bounds = array<i64: 1, 32>}, {transform_indices = @transform_3, window_bounds = array<i64: 8, 32>}]} {
    %c0 = arith.constant 0 : index
    %c0_0 = arith.constant 0 : index
    %0 = vector.load %arg1[%c0, %c0_0] : memref<8x640xbf16, #tpu.memory_space<vmem>>, vector<8x640xbf16>
    %c0_1 = arith.constant 0 : index
    %c0_2 = arith.constant 0 : index
    %1 = vector.load %arg2[%c0_1, %c0_2] : memref<640x32xbf16, #tpu.memory_space<vmem>>, vector<640x32xbf16>
    %cst = arith.constant dense<0.000000e+00> : vector<8x32xf32>
    %2 = tpu.matmul %0, %1, %cst {dimension_numbers = #tpu.dot_dimension_numbers<[1], [0], [0], [1], [0, 0, 1, 1], [], []>} : vector<8x640xbf16>, vector<640x32xbf16>, vector<8x32xf32> -> vector<8x32xf32>
    %c0_3 = arith.constant 0 : index
    %c0_4 = arith.constant 0 : index
    %3 = vector.load %arg3[%c0_3, %c0_4] : memref<1x32xf32, #tpu.memory_space<vmem>>, vector<1x32xf32>
    %4 = vector.broadcast %3 : vector<1x32xf32> to vector<8x32xf32>
    %5 = arith.addf %2, %4 : vector<8x32xf32>
    %c0_5 = arith.constant 0 : index
    %c0_6 = arith.constant 0 : index
    %6 = vector.load %arg4[%c0_5, %c0_6] : memref<8x32xf32, #tpu.memory_space<vmem>>, vector<8x32xf32>
    tpu.vector_store %arg4[%c0_5, %c0_6], %5 {strides = array<i32>} : memref<8x32xf32, #tpu.memory_space<vmem>>, vector<8x32xf32>,
    return
  }
  func.func @transform_0(%arg0: i32) -> (i32, i32) {
    %c0_i32 = arith.constant 0 : i32
    %c0_i32_0 = arith.constant 0 : i32
    return %arg0, %c0_i32 : i32, i32
  }
  func.func @transform_1(%arg0: i32) -> (i32, i32) {
    %c0_i32 = arith.constant 0 : i32
    %c0_i32_0 = arith.constant 0 : i32
    %c0_i32_1 = arith.constant 0 : i32
    return %c0_i32, %c0_i32_0 : i32, i32
  }
  func.func @transform_2(%arg0: i32) -> (i32, i32) {
    %c0_i32 = arith.constant 0 : i32
    %c0_i32_0 = arith.constant 0 : i32
    %c0_i32_1 = arith.constant 0 : i32
    return %c0_i32, %c0_i32_0 : i32, i32
  }
  func.func @transform_3(%arg0: i32) -> (i32, i32) {
    %c0_i32 = arith.constant 0 : i32
    %c0_i32_0 = arith.constant 0 : i32
    return %arg0, %c0_i32 : i32, i32
  }
}

module attributes {stable_mosaic.version = 11 : i64} {
  func.func @_stack_kernel(%arg0: i32, %arg1: i32, %arg2: memref<8x32xf32, #tpu.memory_space<vmem>>, %arg3: memref<1x8x32xf32, #tpu.memory_space<vmem>>, %arg4: memref<1x32x96xbf16, #tpu.memory_space<vmem>>, %arg5: memref<1x1x96xf32, #tpu.memory_space<vmem>>, %arg6: memref<1x32x32xbf16, #tpu.memory_space<vmem>>, %arg7: memref<1x32x64xbf16, #tpu.memory_space<vmem>>, %arg8: memref<1x1x64xf32, #tpu.memory_space<vmem>>, %arg9: memref<1x64x32xbf16, #tpu.memory_space<vmem>>, %arg10: memref<8x32xf32, #tpu.memory_space<vmem>>, %arg11: memref<8x8xf32, #tpu.memory_space<vmem>>) attributes {dimension_semantics = [#tpu.dimension_semantics<parallel>, #tpu.dimension_semantics<arbitrary>], iteration_bounds = array<i64: 1, 3>, scalar_prefetch = 0 : i64, scratch_operands = 1 : i64, tpu.core_type = #tpu.core_type<tc>, window_params = [{transform_indices = @transform_0, window_bounds = array<i64: 8, 32>}, {transform_indices = @transform_1, window_bounds = array<i64: 1, 8, 32>}, {transform_indices = @transform_2, window_bounds = array<i64: 1, 32, 96>}, {transform_indices = @transform_3, window_bounds = array<i64: 1, 1, 96>}, {transform_indices = @transform_4, window_bounds = array<i64: 1, 32, 32>}, {transform_indices = @transform_5, window_bounds = array<i64: 1, 32, 64>}, {transform_indices = @transform_6, window_bounds = array<i64: 1, 1, 64>}, {transform_indices = @transform_7, window_bounds = array<i64: 1, 64, 32>}, {transform_indices = @transform_8, window_bounds = array<i64: 8, 32>}]} {
    %c0_i32 = arith.constant 0 : i32
    %0 = arith.cmpi eq, %arg1, %c0_i32 : i32
    %1 = arith.extui %0 : i1 to i32
    %c0_i32_0 = arith.constant 0 : i32
    %2 = arith.cmpi ne, %1, %c0_i32_0 : i32
    scf.if %2 {
      %c0_70 = arith.constant 0 : index
      %c0_71 = arith.constant 0 : index
      %204 = vector.load %arg2[%c0_70, %c0_71] : memref<8x32xf32, #tpu.memory_space<vmem>>, vector<8x32xf32>
      %c0_72 = arith.constant 0 : index
      %c0_73 = arith.constant 0 : index
      %205 = vector.load %arg10[%c0_72, %c0_73] : memref<8x32xf32, #tpu.memory_space<vmem>>, vector<8x32xf32>
      tpu.vector_store %arg10[%c0_72, %c0_73], %204 {strides = array<i32>} : memref<8x32xf32, #tpu.memory_space<vmem>>, vector<8x32xf32>,
      %206 = tpu.iota {dimensions = array<i32: 1>} : vector<8x8xi32>
      %c5_i32 = arith.constant 5 : i32
      %207 = vector.broadcast %c5_i32 : i32 to vector<8x8xi32>
      %208 = arith.cmpi slt, %206, %207 : vector<8x8xi32>
      %cst_74 = arith.constant 0.000000e+00 : f32
      %cst_75 = arith.constant -1.000000e+09 : f32
      %209 = vector.broadcast %cst_74 : f32 to vector<8x8xf32>
      %210 = vector.broadcast %cst_75 : f32 to vector<8x8xf32>
      %211 = arith.select %208, %209, %210 : vector<8x8xi1>, vector<8x8xf32>
      %c0_76 = arith.constant 0 : index
      %c0_77 = arith.constant 0 : index
      %212 = vector.load %arg11[%c0_76, %c0_77] : memref<8x8xf32, #tpu.memory_space<vmem>>, vector<8x8xf32>
      tpu.vector_store %arg11[%c0_76, %c0_77], %211 {strides = array<i32>} : memref<8x8xf32, #tpu.memory_space<vmem>>, vector<8x8xf32>,
    } else {
    }
    %c0 = arith.constant 0 : index
    %c0_1 = arith.constant 0 : index
    %3 = vector.load %arg10[%c0, %c0_1] : memref<8x32xf32, #tpu.memory_space<vmem>>, vector<8x32xf32>
    %c0_2 = arith.constant 0 : index
    %c0_3 = arith.constant 0 : index
    %c0_4 = arith.constant 0 : index
    %4 = vector.load %arg3[%c0_2, %c0_3, %c0_4] : memref<1x8x32xf32, #tpu.memory_space<vmem>>, vector<1x8x32xf32>
    %5 = vector.shape_cast %4 : vector<1x8x32xf32> to vector<8x32xf32>
    %6 = vector.extract_strided_slice %5 {offsets = [0, 0], sizes = [1, 32], strides = [1, 1]} : vector<8x32xf32> to vector<1x32xf32>
    %7 = vector.extract_strided_slice %5 {offsets = [1, 0], sizes = [1, 32], strides = [1, 1]} : vector<8x32xf32> to vector<1x32xf32>
    %8 = vector.extract_strided_slice %5 {offsets = [2, 0], sizes = [1, 32], strides = [1, 1]} : vector<8x32xf32> to vector<1x32xf32>
    %9 = vector.extract_strided_slice %5 {offsets = [3, 0], sizes = [1, 32], strides = [1, 1]} : vector<8x32xf32> to vector<1x32xf32>
    %10 = vector.extract_strided_slice %5 {offsets = [4, 0], sizes = [1, 32], strides = [1, 1]} : vector<8x32xf32> to vector<1x32xf32>
    %11 = vector.extract_strided_slice %5 {offsets = [5, 0], sizes = [1, 32], strides = [1, 1]} : vector<8x32xf32> to vector<1x32xf32>
    %cst = arith.constant dense<0.000000e+00> : vector<8xf32>
    %12 = vector.multi_reduction <add>, %3, %cst [1] : vector<8x32xf32> to vector<8xf32>
    %13 = vector.shape_cast %12 : vector<8xf32> to vector<8x1xf32>
    %cst_5 = arith.constant 3.200000e+01 : f32
    %14 = vector.broadcast %cst_5 : f32 to vector<8x1xf32>
    %15 = arith.divf %13, %14 : vector<8x1xf32>
    %16 = vector.broadcast %15 : vector<8x1xf32> to vector<8x32xf32>
    %17 = arith.subf %3, %16 : vector<8x32xf32>
    %18 = arith.mulf %17, %17 : vector<8x32xf32>
    %cst_6 = arith.constant dense<0.000000e+00> : vector<8xf32>
    %19 = vector.multi_reduction <add>, %18, %cst_6 [1] : vector<8x32xf32> to vector<8xf32>
    %20 = vector.shape_cast %19 : vector<8xf32> to vector<8x1xf32>
    %cst_7 = arith.constant 3.200000e+01 : f32
    %21 = vector.broadcast %cst_7 : f32 to vector<8x1xf32>
    %22 = arith.divf %20, %21 : vector<8x1xf32>
    %23 = vector.broadcast %15 : vector<8x1xf32> to vector<8x32xf32>
    %24 = arith.subf %3, %23 : vector<8x32xf32>
    %cst_8 = arith.constant 9.99999974E-6 : f32
    %25 = vector.broadcast %cst_8 : f32 to vector<8x1xf32>
    %26 = arith.addf %22, %25 : vector<8x1xf32>
    %27 = math.rsqrt %26 : vector<8x1xf32>
    %28 = vector.broadcast %27 : vector<8x1xf32> to vector<8x32xf32>
    %29 = arith.mulf %24, %28 : vector<8x32xf32>
    %30 = vector.broadcast %6 : vector<1x32xf32> to vector<8x32xf32>
    %31 = arith.mulf %29, %30 : vector<8x32xf32>
    %32 = vector.broadcast %7 : vector<1x32xf32> to vector<8x32xf32>
    %33 = arith.addf %31, %32 : vector<8x32xf32>
    %34 = arith.truncf %33 : vector<8x32xf32> to vector<8x32xbf16>
    %c0_9 = arith.constant 0 : index
    %c0_10 = arith.constant 0 : index
    %c0_11 = arith.constant 0 : index
    %35 = vector.load %arg4[%c0_9, %c0_10, %c0_11] : memref<1x32x96xbf16, #tpu.memory_space<vmem>>, vector<1x32x96xbf16>
    %36 = vector.shape_cast %35 : vector<1x32x96xbf16> to vector<32x96xbf16>
    %cst_12 = arith.constant dense<0.000000e+00> : vector<8x96xf32>
    %37 = tpu.matmul %34, %36, %cst_12 {dimension_numbers = #tpu.dot_dimension_numbers<[1], [0], [0], [1], [0, 0, 1, 1], [], []>} : vector<8x32xbf16>, vector<32x96xbf16>, vector<8x96xf32> -> vector<8x96xf32>
    %c0_13 = arith.constant 0 : index
    %c0_14 = arith.constant 0 : index
    %c0_15 = arith.constant 0 : index
    %38 = vector.load %arg5[%c0_13, %c0_14, %c0_15] : memref<1x1x96xf32, #tpu.memory_space<vmem>>, vector<1x1x96xf32>
    %39 = vector.shape_cast %38 : vector<1x1x96xf32> to vector<1x96xf32>
    %40 = vector.broadcast %39 : vector<1x96xf32> to vector<8x96xf32>
    %41 = arith.addf %37, %40 : vector<8x96xf32>
    %42 = vector.extract_strided_slice %41 {offsets = [0, 0], sizes = [8, 32], strides = [1, 1]} : vector<8x96xf32> to vector<8x32xf32>
    %43 = vector.shape_cast %42 : vector<8x32xf32> to vector<1x8x32xf32>
    %44 = vector.extract_strided_slice %41 {offsets = [0, 32], sizes = [8, 32], strides = [1, 1]} : vector<8x96xf32> to vector<8x32xf32>
    %45 = vector.shape_cast %44 : vector<8x32xf32> to vector<1x8x32xf32>
    %46 = vector.extract_strided_slice %41 {offsets = [0, 64], sizes = [8, 32], strides = [1, 1]} : vector<8x96xf32> to vector<8x32xf32>
    %47 = vector.shape_cast %46 : vector<8x32xf32> to vector<1x8x32xf32>
    %48 = vector.extract_strided_slice %43 {offsets = [0, 0, 0], sizes = [1, 8, 8], strides = [1, 1, 1]} : vector<1x8x32xf32> to vector<1x8x8xf32>
    %49 = arith.truncf %48 : vector<1x8x8xf32> to vector<1x8x8xbf16>
    %50 = vector.extract_strided_slice %45 {offsets = [0, 0, 0], sizes = [1, 8, 8], strides = [1, 1, 1]} : vector<1x8x32xf32> to vector<1x8x8xf32>
    %51 = arith.truncf %50 : vector<1x8x8xf32> to vector<1x8x8xbf16>
    %52 = vector.extract_strided_slice %47 {offsets = [0, 0, 0], sizes = [1, 8, 8], strides = [1, 1, 1]} : vector<1x8x32xf32> to vector<1x8x8xf32>
    %53 = arith.truncf %52 : vector<1x8x8xf32> to vector<1x8x8xbf16>
    "tpu.trace_start"() <{level = 10 : i32, message = "fqd,fkd->fqk"}> : () -> ()
    %cst_16 = arith.constant dense<0.000000e+00> : vector<1x8x8xf32>
    %54 = tpu.matmul %49, %51, %cst_16 {dimension_numbers = #tpu.dot_dimension_numbers<[2], [2], [1], [1], [0, 0, 0, 1, 1, 1], [0], [0]>} : vector<1x8x8xbf16>, vector<1x8x8xbf16>, vector<1x8x8xf32> -> vector<1x8x8xf32>
    "tpu.trace_stop"() : () -> ()
    %cst_17 = arith.constant 0.353553385 : f32
    %55 = vector.broadcast %cst_17 : f32 to vector<1x8x8xf32>
    %56 = arith.mulf %54, %55 : vector<1x8x8xf32>
    %c0_18 = arith.constant 0 : index
    %c0_19 = arith.constant 0 : index
    %57 = vector.load %arg11[%c0_18, %c0_19] : memref<8x8xf32, #tpu.memory_space<vmem>>, vector<8x8xf32>
    %58 = vector.shape_cast %57 : vector<8x8xf32> to vector<1x8x8xf32>
    %59 = arith.addf %56, %58 : vector<1x8x8xf32>
    %cst_20 = arith.constant dense<0xFF800000> : vector<1x8xf32>
    %60 = vector.multi_reduction <maximumf>, %59, %cst_20 [2] : vector<1x8x8xf32> to vector<1x8xf32>
    %61 = vector.shape_cast %60 : vector<1x8xf32> to vector<1x8x1xf32>
    %62 = vector.broadcast %61 : vector<1x8x1xf32> to vector<1x8x8xf32>
    %63 = arith.subf %59, %62 : vector<1x8x8xf32>
    %64 = math.exp %63 : vector<1x8x8xf32>
    %cst_21 = arith.constant dense<0.000000e+00> : vector<1x8xf32>
    %65 = vector.multi_reduction <add>, %64, %cst_21 [2] : vector<1x8x8xf32> to vector<1x8xf32>
    %66 = vector.shape_cast %65 : vector<1x8xf32> to vector<1x8x1xf32>
    %67 = tpu.reciprocal %66 {approx = true} : vector<1x8x1xf32> -> vector<1x8x1xf32>
    %68 = vector.broadcast %67 : vector<1x8x1xf32> to vector<1x8x8xf32>
    %69 = arith.mulf %64, %68 : vector<1x8x8xf32>
    %70 = arith.truncf %69 : vector<1x8x8xf32> to vector<1x8x8xbf16>
    "tpu.trace_start"() <{level = 10 : i32, message = "fqk,fkd->fqd"}> : () -> ()
    %cst_22 = arith.constant dense<0.000000e+00> : vector<1x8x8xf32>
    %71 = tpu.matmul %70, %53, %cst_22 {dimension_numbers = #tpu.dot_dimension_numbers<[2], [1], [1], [2], [0, 0, 0, 1, 1, 2], [0], [0]>} : vector<1x8x8xbf16>, vector<1x8x8xbf16>, vector<1x8x8xf32> -> vector<1x8x8xf32>
    "tpu.trace_stop"() : () -> ()
    %72 = vector.extract_strided_slice %43 {offsets = [0, 0, 8], sizes = [1, 8, 8], strides = [1, 1, 1]} : vector<1x8x32xf32> to vector<1x8x8xf32>
    %73 = arith.truncf %72 : vector<1x8x8xf32> to vector<1x8x8xbf16>
    %74 = vector.extract_strided_slice %45 {offsets = [0, 0, 8], sizes = [1, 8, 8], strides = [1, 1, 1]} : vector<1x8x32xf32> to vector<1x8x8xf32>
    %75 = arith.truncf %74 : vector<1x8x8xf32> to vector<1x8x8xbf16>
    %76 = vector.extract_strided_slice %47 {offsets = [0, 0, 8], sizes = [1, 8, 8], strides = [1, 1, 1]} : vector<1x8x32xf32> to vector<1x8x8xf32>
    %77 = arith.truncf %76 : vector<1x8x8xf32> to vector<1x8x8xbf16>
    "tpu.trace_start"() <{level = 10 : i32, message = "fqd,fkd->fqk"}> : () -> ()
    %cst_23 = arith.constant dense<0.000000e+00> : vector<1x8x8xf32>
    %78 = tpu.matmul %73, %75, %cst_23 {dimension_numbers = #tpu.dot_dimension_numbers<[2], [2], [1], [1], [0, 0, 0, 1, 1, 1], [0], [0]>} : vector<1x8x8xbf16>, vector<1x8x8xbf16>, vector<1x8x8xf32> -> vector<1x8x8xf32>
    "tpu.trace_stop"() : () -> ()
    %cst_24 = arith.constant 0.353553385 : f32
    %79 = vector.broadcast %cst_24 : f32 to vector<1x8x8xf32>
    %80 = arith.mulf %78, %79 : vector<1x8x8xf32>
    %c0_25 = arith.constant 0 : index
    %c0_26 = arith.constant 0 : index
    %81 = vector.load %arg11[%c0_25, %c0_26] : memref<8x8xf32, #tpu.memory_space<vmem>>, vector<8x8xf32>
    %82 = vector.shape_cast %81 : vector<8x8xf32> to vector<1x8x8xf32>
    %83 = arith.addf %80, %82 : vector<1x8x8xf32>
    %cst_27 = arith.constant dense<0xFF800000> : vector<1x8xf32>
    %84 = vector.multi_reduction <maximumf>, %83, %cst_27 [2] : vector<1x8x8xf32> to vector<1x8xf32>
    %85 = vector.shape_cast %84 : vector<1x8xf32> to vector<1x8x1xf32>
    %86 = vector.broadcast %85 : vector<1x8x1xf32> to vector<1x8x8xf32>
    %87 = arith.subf %83, %86 : vector<1x8x8xf32>
    %88 = math.exp %87 : vector<1x8x8xf32>
    %cst_28 = arith.constant dense<0.000000e+00> : vector<1x8xf32>
    %89 = vector.multi_reduction <add>, %88, %cst_28 [2] : vector<1x8x8xf32> to vector<1x8xf32>
    %90 = vector.shape_cast %89 : vector<1x8xf32> to vector<1x8x1xf32>
    %91 = tpu.reciprocal %90 {approx = true} : vector<1x8x1xf32> -> vector<1x8x1xf32>
    %92 = vector.broadcast %91 : vector<1x8x1xf32> to vector<1x8x8xf32>
    %93 = arith.mulf %88, %92 : vector<1x8x8xf32>
    %94 = arith.truncf %93 : vector<1x8x8xf32> to vector<1x8x8xbf16>
    "tpu.trace_start"() <{level = 10 : i32, message = "fqk,fkd->fqd"}> : () -> ()
    %cst_29 = arith.constant dense<0.000000e+00> : vector<1x8x8xf32>
    %95 = tpu.matmul %94, %77, %cst_29 {dimension_numbers = #tpu.dot_dimension_numbers<[2], [1], [1], [2], [0, 0, 0, 1, 1, 2], [0], [0]>} : vector<1x8x8xbf16>, vector<1x8x8xbf16>, vector<1x8x8xf32> -> vector<1x8x8xf32>
    "tpu.trace_stop"() : () -> ()
    %96 = vector.extract_strided_slice %43 {offsets = [0, 0, 16], sizes = [1, 8, 8], strides = [1, 1, 1]} : vector<1x8x32xf32> to vector<1x8x8xf32>
    %97 = arith.truncf %96 : vector<1x8x8xf32> to vector<1x8x8xbf16>
    %98 = vector.extract_strided_slice %45 {offsets = [0, 0, 16], sizes = [1, 8, 8], strides = [1, 1, 1]} : vector<1x8x32xf32> to vector<1x8x8xf32>
    %99 = arith.truncf %98 : vector<1x8x8xf32> to vector<1x8x8xbf16>
    %100 = vector.extract_strided_slice %47 {offsets = [0, 0, 16], sizes = [1, 8, 8], strides = [1, 1, 1]} : vector<1x8x32xf32> to vector<1x8x8xf32>
    %101 = arith.truncf %100 : vector<1x8x8xf32> to vector<1x8x8xbf16>
    "tpu.trace_start"() <{level = 10 : i32, message = "fqd,fkd->fqk"}> : () -> ()
    %cst_30 = arith.constant dense<0.000000e+00> : vector<1x8x8xf32>
    %102 = tpu.matmul %97, %99, %cst_30 {dimension_numbers = #tpu.dot_dimension_numbers<[2], [2], [1], [1], [0, 0, 0, 1, 1, 1], [0], [0]>} : vector<1x8x8xbf16>, vector<1x8x8xbf16>, vector<1x8x8xf32> -> vector<1x8x8xf32>
    "tpu.trace_stop"() : () -> ()
    %cst_31 = arith.constant 0.353553385 : f32
    %103 = vector.broadcast %cst_31 : f32 to vector<1x8x8xf32>
    %104 = arith.mulf %102, %103 : vector<1x8x8xf32>
    %c0_32 = arith.constant 0 : index
    %c0_33 = arith.constant 0 : index
    %105 = vector.load %arg11[%c0_32, %c0_33] : memref<8x8xf32, #tpu.memory_space<vmem>>, vector<8x8xf32>
    %106 = vector.shape_cast %105 : vector<8x8xf32> to vector<1x8x8xf32>
    %107 = arith.addf %104, %106 : vector<1x8x8xf32>
    %cst_34 = arith.constant dense<0xFF800000> : vector<1x8xf32>
    %108 = vector.multi_reduction <maximumf>, %107, %cst_34 [2] : vector<1x8x8xf32> to vector<1x8xf32>
    %109 = vector.shape_cast %108 : vector<1x8xf32> to vector<1x8x1xf32>
    %110 = vector.broadcast %109 : vector<1x8x1xf32> to vector<1x8x8xf32>
    %111 = arith.subf %107, %110 : vector<1x8x8xf32>
    %112 = math.exp %111 : vector<1x8x8xf32>
    %cst_35 = arith.constant dense<0.000000e+00> : vector<1x8xf32>
    %113 = vector.multi_reduction <add>, %112, %cst_35 [2] : vector<1x8x8xf32> to vector<1x8xf32>
    %114 = vector.shape_cast %113 : vector<1x8xf32> to vector<1x8x1xf32>
    %115 = tpu.reciprocal %114 {approx = true} : vector<1x8x1xf32> -> vector<1x8x1xf32>
    %116 = vector.broadcast %115 : vector<1x8x1xf32> to vector<1x8x8xf32>
    %117 = arith.mulf %112, %116 : vector<1x8x8xf32>
    %118 = arith.truncf %117 : vector<1x8x8xf32> to vector<1x8x8xbf16>
    "tpu.trace_start"() <{level = 10 : i32, message = "fqk,fkd->fqd"}> : () -> ()
    %cst_36 = arith.constant dense<0.000000e+00> : vector<1x8x8xf32>
    %119 = tpu.matmul %118, %101, %cst_36 {dimension_numbers = #tpu.dot_dimension_numbers<[2], [1], [1], [2], [0, 0, 0, 1, 1, 2], [0], [0]>} : vector<1x8x8xbf16>, vector<1x8x8xbf16>, vector<1x8x8xf32> -> vector<1x8x8xf32>
    "tpu.trace_stop"() : () -> ()
    %120 = vector.extract_strided_slice %43 {offsets = [0, 0, 24], sizes = [1, 8, 8], strides = [1, 1, 1]} : vector<1x8x32xf32> to vector<1x8x8xf32>
    %121 = arith.truncf %120 : vector<1x8x8xf32> to vector<1x8x8xbf16>
    %122 = vector.extract_strided_slice %45 {offsets = [0, 0, 24], sizes = [1, 8, 8], strides = [1, 1, 1]} : vector<1x8x32xf32> to vector<1x8x8xf32>
    %123 = arith.truncf %122 : vector<1x8x8xf32> to vector<1x8x8xbf16>
    %124 = vector.extract_strided_slice %47 {offsets = [0, 0, 24], sizes = [1, 8, 8], strides = [1, 1, 1]} : vector<1x8x32xf32> to vector<1x8x8xf32>
    %125 = arith.truncf %124 : vector<1x8x8xf32> to vector<1x8x8xbf16>
    "tpu.trace_start"() <{level = 10 : i32, message = "fqd,fkd->fqk"}> : () -> ()
    %cst_37 = arith.constant dense<0.000000e+00> : vector<1x8x8xf32>
    %126 = tpu.matmul %121, %123, %cst_37 {dimension_numbers = #tpu.dot_dimension_numbers<[2], [2], [1], [1], [0, 0, 0, 1, 1, 1], [0], [0]>} : vector<1x8x8xbf16>, vector<1x8x8xbf16>, vector<1x8x8xf32> -> vector<1x8x8xf32>
    "tpu.trace_stop"() : () -> ()
    %cst_38 = arith.constant 0.353553385 : f32
    %127 = vector.broadcast %cst_38 : f32 to vector<1x8x8xf32>
    %128 = arith.mulf %126, %127 : vector<1x8x8xf32>
    %c0_39 = arith.constant 0 : index
    %c0_40 = arith.constant 0 : index
    %129 = vector.load %arg11[%c0_39, %c0_40] : memref<8x8xf32, #tpu.memory_space<vmem>>, vector<8x8xf32>
    %130 = vector.shape_cast %129 : vector<8x8xf32> to vector<1x8x8xf32>
    %131 = arith.addf %128, %130 : vector<1x8x8xf32>
    %cst_41 = arith.constant dense<0xFF800000> : vector<1x8xf32>
    %132 = vector.multi_reduction <maximumf>, %131, %cst_41 [2] : vector<1x8x8xf32> to vector<1x8xf32>
    %133 = vector.shape_cast %132 : vector<1x8xf32> to vector<1x8x1xf32>
    %134 = vector.broadcast %133 : vector<1x8x1xf32> to vector<1x8x8xf32>
    %135 = arith.subf %131, %134 : vector<1x8x8xf32>
    %136 = math.exp %135 : vector<1x8x8xf32>
    %cst_42 = arith.constant dense<0.000000e+00> : vector<1x8xf32>
    %137 = vector.multi_reduction <add>, %136, %cst_42 [2] : vector<1x8x8xf32> to vector<1x8xf32>
    %138 = vector.shape_cast %137 : vector<1x8xf32> to vector<1x8x1xf32>
    %139 = tpu.reciprocal %138 {approx = true} : vector<1x8x1xf32> -> vector<1x8x1xf32>
    %140 = vector.broadcast %139 : vector<1x8x1xf32> to vector<1x8x8xf32>
    %141 = arith.mulf %136, %140 : vector<1x8x8xf32>
    %142 = arith.truncf %141 : vector<1x8x8xf32> to vector<1x8x8xbf16>
    "tpu.trace_start"() <{level = 10 : i32, message = "fqk,fkd->fqd"}> : () -> ()
    %cst_43 = arith.constant dense<0.000000e+00> : vector<1x8x8xf32>
    %143 = tpu.matmul %142, %125, %cst_43 {dimension_numbers = #tpu.dot_dimension_numbers<[2], [1], [1], [2], [0, 0, 0, 1, 1, 2], [0], [0]>} : vector<1x8x8xbf16>, vector<1x8x8xbf16>, vector<1x8x8xf32> -> vector<1x8x8xf32>
    "tpu.trace_stop"() : () -> ()
    %144 = tpu.concatenate %71, %95, %119, %143 in 2 : vector<1x8x8xf32>, vector<1x8x8xf32>, vector<1x8x8xf32>, vector<1x8x8xf32> -> vector<1x8x32xf32>
    %145 = vector.shape_cast %144 : vector<1x8x32xf32> to vector<8x32xf32>
    %146 = arith.truncf %145 : vector<8x32xf32> to vector<8x32xbf16>
    %c0_44 = arith.constant 0 : index
    %c0_45 = arith.constant 0 : index
    %c0_46 = arith.constant 0 : index
    %147 = vector.load %arg6[%c0_44, %c0_45, %c0_46] : memref<1x32x32xbf16, #tpu.memory_space<vmem>>, vector<1x32x32xbf16>
    %148 = vector.shape_cast %147 : vector<1x32x32xbf16> to vector<32x32xbf16>
    %cst_47 = arith.constant dense<0.000000e+00> : vector<8x32xf32>
    %149 = tpu.matmul %146, %148, %cst_47 {dimension_numbers = #tpu.dot_dimension_numbers<[1], [0], [0], [1], [0, 0, 1, 1], [], []>} : vector<8x32xbf16>, vector<32x32xbf16>, vector<8x32xf32> -> vector<8x32xf32>
    %150 = vector.broadcast %10 : vector<1x32xf32> to vector<8x32xf32>
    %151 = arith.addf %149, %150 : vector<8x32xf32>
    %152 = arith.addf %3, %151 : vector<8x32xf32>
    %cst_48 = arith.constant dense<0.000000e+00> : vector<8xf32>
    %153 = vector.multi_reduction <add>, %152, %cst_48 [1] : vector<8x32xf32> to vector<8xf32>
    %154 = vector.shape_cast %153 : vector<8xf32> to vector<8x1xf32>
    %cst_49 = arith.constant 3.200000e+01 : f32
    %155 = vector.broadcast %cst_49 : f32 to vector<8x1xf32>
    %156 = arith.divf %154, %155 : vector<8x1xf32>
    %157 = vector.broadcast %156 : vector<8x1xf32> to vector<8x32xf32>
    %158 = arith.subf %152, %157 : vector<8x32xf32>
    %159 = arith.mulf %158, %158 : vector<8x32xf32>
    %cst_50 = arith.constant dense<0.000000e+00> : vector<8xf32>
    %160 = vector.multi_reduction <add>, %159, %cst_50 [1] : vector<8x32xf32> to vector<8xf32>
    %161 = vector.shape_cast %160 : vector<8xf32> to vector<8x1xf32>
    %cst_51 = arith.constant 3.200000e+01 : f32
    %162 = vector.broadcast %cst_51 : f32 to vector<8x1xf32>
    %163 = arith.divf %161, %162 : vector<8x1xf32>
    %164 = vector.broadcast %156 : vector<8x1xf32> to vector<8x32xf32>
    %165 = arith.subf %152, %164 : vector<8x32xf32>
    %cst_52 = arith.constant 9.99999974E-6 : f32
    %166 = vector.broadcast %cst_52 : f32 to vector<8x1xf32>
    %167 = arith.addf %163, %166 : vector<8x1xf32>
    %168 = math.rsqrt %167 : vector<8x1xf32>
    %169 = vector.broadcast %168 : vector<8x1xf32> to vector<8x32xf32>
    %170 = arith.mulf %165, %169 : vector<8x32xf32>
    %171 = vector.broadcast %8 : vector<1x32xf32> to vector<8x32xf32>
    %172 = arith.mulf %170, %171 : vector<8x32xf32>
    %173 = vector.broadcast %9 : vector<1x32xf32> to vector<8x32xf32>
    %174 = arith.addf %172, %173 : vector<8x32xf32>
    %175 = arith.truncf %174 : vector<8x32xf32> to vector<8x32xbf16>
    %c0_53 = arith.constant 0 : index
    %c0_54 = arith.constant 0 : index
    %c0_55 = arith.constant 0 : index
    %176 = vector.load %arg7[%c0_53, %c0_54, %c0_55] : memref<1x32x64xbf16, #tpu.memory_space<vmem>>, vector<1x32x64xbf16>
    %177 = vector.shape_cast %176 : vector<1x32x64xbf16> to vector<32x64xbf16>
    %cst_56 = arith.constant dense<0.000000e+00> : vector<8x64xf32>
    %178 = tpu.matmul %175, %177, %cst_56 {dimension_numbers = #tpu.dot_dimension_numbers<[1], [0], [0], [1], [0, 0, 1, 1], [], []>} : vector<8x32xbf16>, vector<32x64xbf16>, vector<8x64xf32> -> vector<8x64xf32>
    %c0_57 = arith.constant 0 : index
    %c0_58 = arith.constant 0 : index
    %c0_59 = arith.constant 0 : index
    %179 = vector.load %arg8[%c0_57, %c0_58, %c0_59] : memref<1x1x64xf32, #tpu.memory_space<vmem>>, vector<1x1x64xf32>
    %180 = vector.shape_cast %179 : vector<1x1x64xf32> to vector<1x64xf32>
    %181 = vector.broadcast %180 : vector<1x64xf32> to vector<8x64xf32>
    %182 = arith.addf %178, %181 : vector<8x64xf32>
    %183 = arith.mulf %182, %182 : vector<8x64xf32>
    %184 = arith.mulf %182, %183 : vector<8x64xf32>
    %cst_60 = arith.constant 4.471500e-02 : f32
    %185 = vector.broadcast %cst_60 : f32 to vector<8x64xf32>
    %186 = arith.mulf %185, %184 : vector<8x64xf32>
    %187 = arith.addf %182, %186 : vector<8x64xf32>
    %cst_61 = arith.constant 0.797884583 : f32
    %188 = vector.broadcast %cst_61 : f32 to vector<8x64xf32>
    %189 = arith.mulf %188, %187 : vector<8x64xf32>
    %190 = math.tanh %189 : vector<8x64xf32>
    %cst_62 = arith.constant 1.000000e+00 : f32
    %191 = vector.broadcast %cst_62 : f32 to vector<8x64xf32>
    %192 = arith.addf %191, %190 : vector<8x64xf32>
    %cst_63 = arith.constant 5.000000e-01 : f32
    %193 = vector.broadcast %cst_63 : f32 to vector<8x64xf32>
    %194 = arith.mulf %193, %192 : vector<8x64xf32>
    %195 = arith.mulf %182, %194 : vector<8x64xf32>
    %196 = arith.truncf %195 : vector<8x64xf32> to vector<8x64xbf16>
    %c0_64 = arith.constant 0 : index
    %c0_65 = arith.constant 0 : index
    %c0_66 = arith.constant 0 : index
    %197 = vector.load %arg9[%c0_64, %c0_65, %c0_66] : memref<1x64x32xbf16, #tpu.memory_space<vmem>>, vector<1x64x32xbf16>
    %198 = vector.shape_cast %197 : vector<1x64x32xbf16> to vector<64x32xbf16>
    %cst_67 = arith.constant dense<0.000000e+00> : vector<8x32xf32>
    %199 = tpu.matmul %196, %198, %cst_67 {dimension_numbers = #tpu.dot_dimension_numbers<[1], [0], [0], [1], [0, 0, 1, 1], [], []>} : vector<8x64xbf16>, vector<64x32xbf16>, vector<8x32xf32> -> vector<8x32xf32>
    %200 = vector.broadcast %11 : vector<1x32xf32> to vector<8x32xf32>
    %201 = arith.addf %199, %200 : vector<8x32xf32>
    %202 = arith.addf %152, %201 : vector<8x32xf32>
    %c0_68 = arith.constant 0 : index
    %c0_69 = arith.constant 0 : index
    %203 = vector.load %arg10[%c0_68, %c0_69] : memref<8x32xf32, #tpu.memory_space<vmem>>, vector<8x32xf32>
    tpu.vector_store %arg10[%c0_68, %c0_69], %202 {strides = array<i32>} : memref<8x32xf32, #tpu.memory_space<vmem>>, vector<8x32xf32>,
    return
  }
  func.func @transform_0(%arg0: i32, %arg1: i32) -> (i32, i32) {
    %c0_i32 = arith.constant 0 : i32
    %c0_i32_0 = arith.constant 0 : i32
    return %arg0, %c0_i32 : i32, i32
  }
  func.func @transform_1(%arg0: i32, %arg1: i32) -> (i32, i32, i32) {
    %c0_i32 = arith.constant 0 : i32
    %c0_i32_0 = arith.constant 0 : i32
    %c0_i32_1 = arith.constant 0 : i32
    return %arg1, %c0_i32, %c0_i32_0 : i32, i32, i32
  }
  func.func @transform_2(%arg0: i32, %arg1: i32) -> (i32, i32, i32) {
    %c0_i32 = arith.constant 0 : i32
    %c0_i32_0 = arith.constant 0 : i32
    %c0_i32_1 = arith.constant 0 : i32
    return %arg1, %c0_i32, %c0_i32_0 : i32, i32, i32
  }
  func.func @transform_3(%arg0: i32, %arg1: i32) -> (i32, i32, i32) {
    %c0_i32 = arith.constant 0 : i32
    %c0_i32_0 = arith.constant 0 : i32
    %c0_i32_1 = arith.constant 0 : i32
    return %arg1, %c0_i32, %c0_i32_0 : i32, i32, i32
  }
  func.func @transform_4(%arg0: i32, %arg1: i32) -> (i32, i32, i32) {
    %c0_i32 = arith.constant 0 : i32
    %c0_i32_0 = arith.constant 0 : i32
    %c0_i32_1 = arith.constant 0 : i32
    return %arg1, %c0_i32, %c0_i32_0 : i32, i32, i32
  }
  func.func @transform_5(%arg0: i32, %arg1: i32) -> (i32, i32, i32) {
    %c0_i32 = arith.constant 0 : i32
    %c0_i32_0 = arith.constant 0 : i32
    %c0_i32_1 = arith.constant 0 : i32
    return %arg1, %c0_i32, %c0_i32_0 : i32, i32, i32
  }
  func.func @transform_6(%arg0: i32, %arg1: i32) -> (i32, i32, i32) {
    %c0_i32 = arith.constant 0 : i32
    %c0_i32_0 = arith.constant 0 : i32
    %c0_i32_1 = arith.constant 0 : i32
    return %arg1, %c0_i32, %c0_i32_0 : i32, i32, i32
  }
  func.func @transform_7(%arg0: i32, %arg1: i32) -> (i32, i32, i32) {
    %c0_i32 = arith.constant 0 : i32
    %c0_i32_0 = arith.constant 0 : i32
    %c0_i32_1 = arith.constant 0 : i32
    return %arg1, %c0_i32, %c0_i32_0 : i32, i32, i32
  }
  func.func @transform_8(%arg0: i32, %arg1: i32) -> (i32, i32) {
    %c0_i32 = arith.constant 0 : i32
    %c0_i32_0 = arith.constant 0 : i32
    return %arg0, %c0_i32 : i32, i32
  }
}

</mosaic_0001>

<llo_original>
// kernel: spatial_frame_features.3
$region0: #{spatial_frame_features.3}
  #allocation0 [shape = 'u32[]', space=smem, size = 0x4, offset = 0x4, fixed_abs, tag = 'smem constant byte address 0x4 - core index']
  #allocation1 [shape = 'u32[144,128]{1,0:T(1,128)}', space=vmem, size = 0x12000, scoped, tag = 'internal scratch']
  #allocation2 [shape = 'f32[8,8]{1,0:T(8,128)}', space=vmem, size = 0x1000, scoped, tag = 'scratch operand']
  %s0 = inlined_call_operand.vmem [shape: f32[8,32], index: 0, kind: input, shape index: {}, may-alias: {0,8}]
  %s1 = inlined_call_operand.vmem [shape: f32[3,8,32], index: 1, kind: input, shape index: {}]
  %s2 = inlined_call_operand.vmem [shape: bf16[3,32,96], index: 2, kind: input, shape index: {}]
  %s3 = inlined_call_operand.vmem [shape: f32[3,1,96], index: 3, kind: input, shape index: {}]
  %s4 = inlined_call_operand.vmem [shape: bf16[3,32,32], index: 4, kind: input, shape index: {}]
  %s5 = inlined_call_operand.vmem [shape: bf16[3,32,64], index: 5, kind: input, shape index: {}]
  %s6 = inlined_call_operand.vmem [shape: f32[3,1,64], index: 6, kind: input, shape index: {}]
  %s7 = inlined_call_operand.vmem [shape: bf16[3,64,32], index: 7, kind: input, shape index: {}]
  %s8 = inlined_call_operand.vmem [shape: f32[8,32], index: 8, kind: output, shape index: {}, may-alias: {0,8}]
  %s9 = sld [smem:[#allocation0]]
  $region69: #{spatial_frame_features.3} parent=0
    _
  %s11 = ssub.s32 1, %s9
  %s12 = scalar_select 0, %s11, %s9
  loop: start=0, step=1, limit=5
  $region2: #{spatial_frame_features.3} parent=0 // loop_pre_header
    _
  $region3: #{spatial_frame_features.3} parent=0 // loop_header
    %s14 = sphi 0, %s18
    %p15 = scmp.ge.s32.totalorder %s14, 5
    %s21 = sphi 0, %s33
    %s22 = sphi 0, %s29
    %s23 = sphi 0, %s21
    %s24 = sphi 0, %s22
    %s25 = sphi 0, %s23
    %s26 = sphi 0, %s24
    %s36 = sphi 0, %s38
    %s39 = sphi 0, %s36
    %s40 = sphi 0, %s39
    %s56 = sphi 0, %s40
    %s62 = sphi 0, %s64
    %s65 = sphi 0, %s62
    %s66 = sphi 0, %s65
    %s82 = sphi 0, %s66
    %s88 = sphi 0, %s90
    %s91 = sphi 0, %s88
    %s92 = sphi 0, %s91
    %s108 = sphi 0, %s92
    %s114 = sphi 0, %s116
    %s117 = sphi 0, %s114
    %s118 = sphi 0, %s117
    %s134 = sphi 0, %s118
    %s140 = sphi 0, %s142
    %s143 = sphi 0, %s140
    %s144 = sphi 0, %s143
    %s160 = sphi 0, %s144
    %s166 = sphi 0, %s168
    %s169 = sphi 0, %s166
    %s170 = sphi 0, %s169
    %s186 = sphi 0, %s170
    %s192 = sphi 0, %s194
    %s195 = sphi 0, %s192
    %s196 = sphi 0, %s195
    %s212 = sphi 0, %s196
    %s218 = sphi 0, %s220
    %s221 = sphi 0, %s218
    %s222 = sphi 0, %s221
    %s238 = sphi 0, %s222
    %s244 = sphi 0, %s246
    %s247 = sphi 0, %s244
    %s248 = sphi 0, %s247
    %s264 = sphi 0, %s248
  $region4: #{spatial_frame_features.3} parent=0 // loop_header_branch
    %17 = sbr.rel (%p15) target = $region8
  $region5: #{spatial_frame_features.3} parent=0 // loop_body
    %s19 = ssub.s32 %s14, 1
    %s20 = ssub.s32 %s14, 2
    %s27 = sadd.s32 1, %s22
    %p28 = scmp.ge.s32.totalorder %s27, 3
    %s29 = scalar_select %p28, 0, %s27
    %s30 = sadd.s32 1, %s21
    %s31 = scalar_select %p28, %s30, %s21
    %p32 = scmp.ge.s32.totalorder %s31, 1
    %s33 = scalar_select %p32, 0, %s31
    %s34 = ssub.s32 %s21, %s33
    %p35 = scmp.eq.s32.totalorder %s34, 0
    %s37 = sadd.s32 %s36, 1
    %s38 = scalar_select %p35, %s36, %s37
    %p41 = pneg %p35
    %p42 = scmp.eq.s32.totalorder %s14, 2
    %p43 = por %p41, %p42
    %p44 = scmp.ne.s32.totalorder %s36, %s39
    %p45 = scmp.eq.s32.totalorder %s14, 0
    %p46 = por %p44, %p45
    %p47 = scmp.ne.s32.totalorder %s36, %s39
    %p48 = scmp.eq.s32.totalorder %s19, 2
    %p49 = por %p47, %p48
    %p50 = scmp.ne.s32.totalorder %s39, %s40
    %p51 = scmp.eq.s32.totalorder %s19, 0
    %p52 = por %p50, %p51
    %p53 = scmp.ne.s32.totalorder %s39, %s40
    %p54 = scmp.eq.s32.totalorder %s20, 2
    %p55 = por %p53, %p54
    %p57 = scmp.ne.s32.totalorder %s40, %s56
    %p58 = scmp.eq.s32.totalorder %s20, 0
    %p59 = por %p57, %p58
    %s60 = ssub.s32 %s22, %s29
    %p61 = scmp.eq.s32.totalorder %s60, 0
    %s63 = sadd.s32 %s62, 1
    %s64 = scalar_select %p61, %s62, %s63
    %p67 = pneg %p61
    %p68 = scmp.eq.s32.totalorder %s14, 2
    %p69 = por %p67, %p68
    %p70 = scmp.ne.s32.totalorder %s62, %s65
    %p71 = scmp.eq.s32.totalorder %s14, 0
    %p72 = por %p70, %p71
    %p73 = scmp.ne.s32.totalorder %s62, %s65
    %p74 = scmp.eq.s32.totalorder %s19, 2
    %p75 = por %p73, %p74
    %p76 = scmp.ne.s32.totalorder %s65, %s66
    %p77 = scmp.eq.s32.totalorder %s19, 0
    %p78 = por %p76, %p77
    %p79 = scmp.ne.s32.totalorder %s65, %s66
    %p80 = scmp.eq.s32.totalorder %s20, 2
    %p81 = por %p79, %p80
    %p83 = scmp.ne.s32.totalorder %s66, %s82
    %p84 = scmp.eq.s32.totalorder %s20, 0
    %p85 = por %p83, %p84
    %s86 = ssub.s32 %s22, %s29
    %p87 = scmp.eq.s32.totalorder %s86, 0
    %s89 = sadd.s32 %s88, 1
    %s90 = scalar_select %p87, %s88, %s89
    %p93 = pneg %p87
    %p94 = scmp.eq.s32.totalorder %s14, 2
    %p95 = por %p93, %p94
    %p96 = scmp.ne.s32.totalorder %s88, %s91
    %p97 = scmp.eq.s32.totalorder %s14, 0
    %p98 = por %p96, %p97
    %p99 = scmp.ne.s32.totalorder %s88, %s91
    %p100 = scmp.eq.s32.totalorder %s19, 2
    %p101 = por %p99, %p100
    %p102 = scmp.ne.s32.totalorder %s91, %s92
    %p103 = scmp.eq.s32.totalorder %s19, 0
    %p104 = por %p102, %p103
    %p105 = scmp.ne.s32.totalorder %s91, %s92
    %p106 = scmp.eq.s32.totalorder %s20, 2
    %p107 = por %p105, %p106
    %p109 = scmp.ne.s32.totalorder %s92, %s108
    %p110 = scmp.eq.s32.totalorder %s20, 0
    %p111 = por %p109, %p110
    %s112 = ssub.s32 %s22, %s29
    %p113 = scmp.eq.s32.totalorder %s112, 0
    %s115 = sadd.s32 %s114, 1
    %s116 = scalar_select %p113, %s114, %s115
    %p119 = pneg %p113
    %p120 = scmp.eq.s32.totalorder %s14, 2
    %p121 = por %p119, %p120
    %p122 = scmp.ne.s32.totalorder %s114, %s117
    %p123 = scmp.eq.s32.totalorder %s14, 0
    %p124 = por %p122, %p123
    %p125 = scmp.ne.s32.totalorder %s114, %s117
    %p126 = scmp.eq.s32.totalorder %s19, 2
    %p127 = por %p125, %p126
    %p128 = scmp.ne.s32.totalorder %s117, %s118
    %p129 = scmp.eq.s32.totalorder %s19, 0
    %p130 = por %p128, %p129
    %p131 = scmp.ne.s32.totalorder %s117, %s118
    %p132 = scmp.eq.s32.totalorder %s20, 2
    %p133 = por %p131, %p132
    %p135 = scmp.ne.s32.totalorder %s118, %s134
    %p136 = scmp.eq.s32.totalorder %s20, 0
    %p137 = por %p135, %p136
    %s138 = ssub.s32 %s22, %s29
    %p139 = scmp.eq.s32.totalorder %s138, 0
    %s141 = sadd.s32 %s140, 1
    %s142 = scalar_select %p139, %s140, %s141
    %p145 = pneg %p139
    %p146 = scmp.eq.s32.totalorder %s14, 2
    %p147 = por %p145, %p146
    %p148 = scmp.ne.s32.totalorder %s140, %s143
    %p149 = scmp.eq.s32.totalorder %s14, 0
    %p150 = por %p148, %p149
    %p151 = scmp.ne.s32.totalorder %s140, %s143
    %p152 = scmp.eq.s32.totalorder %s19, 2
    %p153 = por %p151, %p152
    %p154 = scmp.ne.s32.totalorder %s143, %s144
    %p155 = scmp.eq.s32.totalorder %s19, 0
    %p156 = por %p154, %p155
    %p157 = scmp.ne.s32.totalorder %s143, %s144
    %p158 = scmp.eq.s32.totalorder %s20, 2
    %p159 = por %p157, %p158
    %p161 = scmp.ne.s32.totalorder %s144, %s160
    %p162 = scmp.eq.s32.totalorder %s20, 0
    %p163 = por %p161, %p162
    %s164 = ssub.s32 %s22, %s29
    %p165 = scmp.eq.s32.totalorder %s164, 0
    %s167 = sadd.s32 %s166, 1
    %s168 = scalar_select %p165, %s166, %s167
    %p171 = pneg %p165
    %p172 = scmp.eq.s32.totalorder %s14, 2
    %p173 = por %p171, %p172
    %p174 = scmp.ne.s32.totalorder %s166, %s169
    %p175 = scmp.eq.s32.totalorder %s14, 0
    %p176 = por %p174, %p175
    %p177 = scmp.ne.s32.totalorder %s166, %s169
    %p178 = scmp.eq.s32.totalorder %s19, 2
    %p179 = por %p177, %p178
    %p180 = scmp.ne.s32.totalorder %s169, %s170
    %p181 = scmp.eq.s32.totalorder %s19, 0
    %p182 = por %p180, %p181
    %p183 = scmp.ne.s32.totalorder %s169, %s170
    %p184 = scmp.eq.s32.totalorder %s20, 2
    %p185 = por %p183, %p184
    %p187 = scmp.ne.s32.totalorder %s170, %s186
    %p188 = scmp.eq.s32.totalorder %s20, 0
    %p189 = por %p187, %p188
    %s190 = ssub.s32 %s22, %s29
    %p191 = scmp.eq.s32.totalorder %s190, 0
    %s193 = sadd.s32 %s192, 1
    %s194 = scalar_select %p191, %s192, %s193
    %p197 = pneg %p191
    %p198 = scmp.eq.s32.totalorder %s14, 2
    %p199 = por %p197, %p198
    %p200 = scmp.ne.s32.totalorder %s192, %s195
    %p201 = scmp.eq.s32.totalorder %s14, 0
    %p202 = por %p200, %p201
    %p203 = scmp.ne.s32.totalorder %s192, %s195
    %p204 = scmp.eq.s32.totalorder %s19, 2
    %p205 = por %p203, %p204
    %p206 = scmp.ne.s32.totalorder %s195, %s196
    %p207 = scmp.eq.s32.totalorder %s19, 0
    %p208 = por %p206, %p207
    %p209 = scmp.ne.s32.totalorder %s195, %s196
    %p210 = scmp.eq.s32.totalorder %s20, 2
    %p211 = por %p209, %p210
    %p213 = scmp.ne.s32.totalorder %s196, %s212
    %p214 = scmp.eq.s32.totalorder %s20, 0
    %p215 = por %p213, %p214
    %s216 = ssub.s32 %s22, %s29
    %p217 = scmp.eq.s32.totalorder %s216, 0
    %s219 = sadd.s32 %s218, 1
    %s220 = scalar_select %p217, %s218, %s219
    %p223 = pneg %p217
    %p224 = scmp.eq.s32.totalorder %s14, 2
    %p225 = por %p223, %p224
    %p226 = scmp.ne.s32.totalorder %s218, %s221
    %p227 = scmp.eq.s32.totalorder %s14, 0
    %p228 = por %p226, %p227
    %p229 = scmp.ne.s32.totalorder %s218, %s221
    %p230 = scmp.eq.s32.totalorder %s19, 2
    %p231 = por %p229, %p230
    %p232 = scmp.ne.s32.totalorder %s221, %s222
    %p233 = scmp.eq.s32.totalorder %s19, 0
    %p234 = por %p232, %p233
    %p235 = scmp.ne.s32.totalorder %s221, %s222
    %p236 = scmp.eq.s32.totalorder %s20, 2
    %p237 = por %p235, %p236
    %p239 = scmp.ne.s32.totalorder %s222, %s238
    %p240 = scmp.eq.s32.totalorder %s20, 0
    %p241 = por %p239, %p240
    %s242 = ssub.s32 %s21, %s33
    %p243 = scmp.eq.s32.totalorder %s242, 0
    %s245 = sadd.s32 %s244, 1
    %s246 = scalar_select %p243, %s244, %s245
    %p249 = pneg %p243
    %p250 = scmp.eq.s32.totalorder %s14, 2
    %p251 = por %p249, %p250
    %p252 = scmp.ne.s32.totalorder %s244, %s247
    %p253 = scmp.eq.s32.totalorder %s14, 0
    %p254 = por %p252, %p253
    %p255 = scmp.ne.s32.totalorder %s244, %s247
    %p256 = scmp.eq.s32.totalorder %s19, 2
    %p257 = por %p255, %p256
    %p258 = scmp.ne.s32.totalorder %s247, %s248
    %p259 = scmp.eq.s32.totalorder %s19, 0
    %p260 = por %p258, %p259
    %p261 = scmp.ne.s32.totalorder %s247, %s248
    %p262 = scmp.eq.s32.totalorder %s20, 2
    %p263 = por %p261, %p262
    %p265 = scmp.ne.s32.totalorder %s248, %s264
    %p266 = scmp.eq.s32.totalorder %s20, 0
    %p267 = por %p265, %p266
    %p268 = scmp.le.s32.totalorder 1, %s14
    %p269 = scmp.lt.s32.totalorder %s14, 4
    %p270 = pnand %p268, %p269
    %p271 = pneg %p270
    // Predicated region
    $region9: #{spatial_frame_features.3} parent=5 // pred_check
      _
    $region10: #{spatial_frame_features.3} parent=5 // pred_check_branch
      %273 = sbr.rel (%p270) target = $region12
    $region11: #{spatial_frame_features.3} parent=5 // pred_region
      %s274 = ssub.s32 %s14, 1
      // Predicated region
      $region13: #{spatial_frame_features.3} parent=11 // pred_check
        %p275 = pneg %p52
      $region14: #{spatial_frame_features.3} parent=11 // pred_check_branch
        %277 = sbr.rel (%p275) target = $region16
      $region15: #{spatial_frame_features.3} parent=11 // pred_region
        %p278 = scmp.lt.s32.totalorder %s23, 0
        %s279 = scalar_select %p278, %s23, 0
        %s280 = smul.addr %s279, 8
        %s281 = scalar_lea.vmem %s0, %s280
      $region16: #{spatial_frame_features.3} parent=11 // pred_fallthru
        _
    $region12: #{spatial_frame_features.3} parent=5 // pred_fallthru
      _
    %p282 = scmp.lt.s32.totalorder %s14, 3
    // Predicated region
    $region17: #{spatial_frame_features.3} parent=5 // pred_check
      %p283 = pneg %p282
    $region18: #{spatial_frame_features.3} parent=5 // pred_check_branch
      %285 = sbr.rel (%p283) target = $region20
    $region19: #{spatial_frame_features.3} parent=5 // pred_region
      // Predicated region
      $region21: #{spatial_frame_features.3} parent=19 // pred_check
        %p286 = pneg %p72
      $region22: #{spatial_frame_features.3} parent=19 // pred_check_branch
        %288 = sbr.rel (%p286) target = $region24
      $region23: #{spatial_frame_features.3} parent=19 // pred_region
        %p289 = scmp.lt.s32.totalorder %s22, 2
        %s290 = scalar_select %p289, %s22, 2
        %s291 = smul.addr %s290, 8
        %s292 = scalar_lea.vmem %s1, %s291
      $region24: #{spatial_frame_features.3} parent=19 // pred_fallthru
        _
      // Predicated region
      $region25: #{spatial_frame_features.3} parent=19 // pred_check
        %p293 = pneg %p98
      $region26: #{spatial_frame_features.3} parent=19 // pred_check_branch
        %295 = sbr.rel (%p293) target = $region28
      $region27: #{spatial_frame_features.3} parent=19 // pred_region
        %p296 = scmp.lt.s32.totalorder %s22, 2
        %s297 = scalar_select %p296, %s22, 2
        %s298 = smul.addr %s297, 4
        %s299 = smul.addr %s298, 4
        %s300 = scalar_lea.vmem %s2, %s299
      $region28: #{spatial_frame_features.3} parent=19 // pred_fallthru
        _
      // Predicated region
      $region29: #{spatial_frame_features.3} parent=19 // pred_check
        %p301 = pneg %p124
      $region30: #{spatial_frame_features.3} parent=19 // pred_check_branch
        %303 = sbr.rel (%p301) target = $region32
      $region31: #{spatial_frame_features.3} parent=19 // pred_region
        %p304 = scmp.lt.s32.totalorder %s22, 2
        %s305 = scalar_select %p304, %s22, 2
        %s306 = scalar_lea.vmem %s3, %s305
      $region32: #{spatial_frame_features.3} parent=19 // pred_fallthru
        _
      // Predicated region
      $region33: #{spatial_frame_features.3} parent=19 // pred_check
        %p307 = pneg %p150
      $region34: #{spatial_frame_features.3} parent=19 // pred_check_branch
        %309 = sbr.rel (%p307) target = $region36
      $region35: #{spatial_frame_features.3} parent=19 // pred_region
        %p310 = scmp.lt.s32.totalorder %s22, 2
        %s311 = scalar_select %p310, %s22, 2
        %s312 = smul.addr %s311, 4
        %s313 = smul.addr %s312, 4
        %s314 = scalar_lea.vmem %s4, %s313
      $region36: #{spatial_frame_features.3} parent=19 // pred_fallthru
        _
      // Predicated region
      $region37: #{spatial_frame_features.3} parent=19 // pred_check
        %p315 = pneg %p176
      $region38: #{spatial_frame_features.3} parent=19 // pred_check_branch
        %317 = sbr.rel (%p315) target = $region40
      $region39: #{spatial_frame_features.3} parent=19 // pred_region
        %p318 = scmp.lt.s32.totalorder %s22, 2
        %s319 = scalar_select %p318, %s22, 2
        %s320 = smul.addr %s319, 4
        %s321 = smul.addr %s320, 4
        %s322 = scalar_lea.vmem %s5, %s321
      $region40: #{spatial_frame_features.3} parent=19 // pred_fallthru
        _
      // Predicated region
      $region41: #{spatial_frame_features.3} parent=19 // pred_check
        %p323 = pneg %p202
      $region42: #{spatial_frame_features.3} parent=19 // pred_check_branch
        %325 = sbr.rel (%p323) target = $region44
      $region43: #{spatial_frame_features.3} parent=19 // pred_region
        %p326 = scmp.lt.s32.totalorder %s22, 2
        %s327 = scalar_select %p326, %s22, 2
        %s328 = scalar_lea.vmem %s6, %s327
      $region44: #{spatial_frame_features.3} parent=19 // pred_fallthru
        _
      // Predicated region
      $region45: #{spatial_frame_features.3} parent=19 // pred_check
        %p329 = pneg %p228
      $region46: #{spatial_frame_features.3} parent=19 // pred_check_branch
        %331 = sbr.rel (%p329) target = $region48
      $region47: #{spatial_frame_features.3} parent=19 // pred_region
        %p332 = scmp.lt.s32.totalorder %s22, 2
        %s333 = scalar_select %p332, %s22, 2
        %s334 = smul.addr %s333, 8
        %s335 = smul.addr %s334, 4
        %s336 = scalar_lea.vmem %s7, %s335
      $region48: #{spatial_frame_features.3} parent=19 // pred_fallthru
        _
    $region20: #{spatial_frame_features.3} parent=5 // pred_fallthru
      _
    %p337 = scmp.le.s32.totalorder 1, %s14
    %p338 = scmp.lt.s32.totalorder %s14, 4
    %p339 = pnand %p337, %p338
    %p340 = pneg %p339
    // Predicated region
    $region49: #{spatial_frame_features.3} parent=5 // pred_check
      _
    $region50: #{spatial_frame_features.3} parent=5 // pred_check_branch
      %342 = sbr.rel (%p339) target = $region52
    $region51: #{spatial_frame_features.3} parent=5 // pred_region
      %s343 = ssub.s32 %s14, 1
      %p344 = scmp.lt.s32.totalorder %s23, 0
      %s345 = scalar_select %p344, %s23, 0
      %s346 = smul.addr %s345, 8
      %s347 = scalar_lea.vmem %s0, %s346
      %p348 = pneg %p52
      %p349 = pneg %p49
      %p350 = scmp.lt.s32.totalorder %s24, 2
      %s351 = scalar_select %p350, %s24, 2
      %s352 = smul.addr %s351, 8
      %s353 = scalar_lea.vmem %s1, %s352
      %p354 = pneg %p78
      %p355 = pneg %p75
      %p356 = scmp.lt.s32.totalorder %s24, 2
      %s357 = scalar_select %p356, %s24, 2
      %s358 = smul.addr %s357, 4
      %s359 = smul.addr %s358, 4
      %s360 = scalar_lea.vmem %s2, %s359
      %p361 = pneg %p104
      %p362 = pneg %p101
      %p363 = scmp.lt.s32.totalorder %s24, 2
      %s364 = scalar_select %p363, %s24, 2
      %s365 = scalar_lea.vmem %s3, %s364
      %p366 = pneg %p130
      %p367 = pneg %p127
      %p368 = scmp.lt.s32.totalorder %s24, 2
      %s369 = scalar_select %p368, %s24, 2
      %s370 = smul.addr %s369, 4
      %s371 = smul.addr %s370, 4
      %s372 = scalar_lea.vmem %s4, %s371
      %p373 = pneg %p156
      %p374 = pneg %p153
      %p375 = scmp.lt.s32.totalorder %s24, 2
      %s376 = scalar_select %p375, %s24, 2
      %s377 = smul.addr %s376, 4
      %s378 = smul.addr %s377, 4
      %s379 = scalar_lea.vmem %s5, %s378
      %p380 = pneg %p182
      %p381 = pneg %p179
      %p382 = scmp.lt.s32.totalorder %s24, 2
      %s383 = scalar_select %p382, %s24, 2
      %s384 = scalar_lea.vmem %s6, %s383
      %p385 = pneg %p208
      %p386 = pneg %p205
      %p387 = scmp.lt.s32.totalorder %s24, 2
      %s388 = scalar_select %p387, %s24, 2
      %s389 = smul.addr %s388, 8
      %s390 = smul.addr %s389, 4
      %s391 = scalar_lea.vmem %s7, %s390
      %p392 = pneg %p234
      %p393 = pneg %p231
      %p394 = pneg %p260
      %p395 = pneg %p257
      %p396 = scmp.lt.s32.totalorder %s23, 0
      %s397 = scalar_select %p396, %s23, 0
      %s398 = smul.addr %s397, 8
      %s399 = scalar_lea.vmem %s8, %s398
      %p400 = scmp.lt.s32.totalorder %s23, 0
      %s401 = scalar_select %p400, %s23, 0
      %s402 = smul.addr %s401, 8
      %s403 = scalar_lea.vmem %s0, %s402
      %p404 = scmp.lt.s32.totalorder %s24, 2
      %s405 = scalar_select %p404, %s24, 2
      %s406 = smul.addr %s405, 8
      %s407 = scalar_lea.vmem %s1, %s406
      %p408 = scmp.lt.s32.totalorder %s24, 2
      %s409 = scalar_select %p408, %s24, 2
      %s410 = smul.addr %s409, 4
      %s411 = smul.addr %s410, 4
      %s412 = scalar_lea.vmem %s2, %s411
      %p413 = scmp.lt.s32.totalorder %s24, 2
      %s414 = scalar_select %p413, %s24, 2
      %s415 = scalar_lea.vmem %s3, %s414
      %p416 = scmp.lt.s32.totalorder %s24, 2
      %s417 = scalar_select %p416, %s24, 2
      %s418 = smul.addr %s417, 4
      %s419 = smul.addr %s418, 4
      %s420 = scalar_lea.vmem %s4, %s419
      %p421 = scmp.lt.s32.totalorder %s24, 2
      %s422 = scalar_select %p421, %s24, 2
      %s423 = smul.addr %s422, 4
      %s424 = smul.addr %s423, 4
      %s425 = scalar_lea.vmem %s5, %s424
      %p426 = scmp.lt.s32.totalorder %s24, 2
      %s427 = scalar_select %p426, %s24, 2
      %s428 = scalar_lea.vmem %s6, %s427
      %p429 = scmp.lt.s32.totalorder %s24, 2
      %s430 = scalar_select %p429, %s24, 2
      %s431 = smul.addr %s430, 8
      %s432 = smul.addr %s431, 4
      %s433 = scalar_lea.vmem %s7, %s432
      %p434 = scmp.lt.s32.totalorder %s23, 0
      %s435 = scalar_select %p434, %s23, 0
      %s436 = smul.addr %s435, 8
      %s437 = scalar_lea.vmem %s8, %s436
      %p439 = scmp.eq.s32.totalorder %s24, 0
      // Predicated region
      $region53: #{spatial_frame_features.3} parent=51 // pred_check
        %p440 = pneg %p439
      $region54: #{spatial_frame_features.3} parent=51 // pred_check_branch
        %442 = sbr.rel (%p440) target = $region56
      $region55: #{spatial_frame_features.3} parent=51 // pred_region
        %v443 = vld [vmem:[%s403] sm:$0xff]
        %vm444 = vcmask 261120
        %445 = vst.msk [vmem:[%s437] sm:$0xff] %vm444, %v443
        %v446 = vlaneseq
        %v447 = vand.u32 %v446, 127
        %vm448 = vcmp.lt.s32.totalorder %v447, 5
        %v449 = vsel %vm448, 0.0, -1e+09
        %vm450 = vcmask 64512
        %451 = vst.msk [vmem:[#allocation2] sm:$0xff] %vm450, %v449
      $region56: #{spatial_frame_features.3} parent=51 // pred_fallthru
        _
      %v452 = vld [vmem:[%s437] sm:$0xff]
      %v453 = vld [vmem:[%s407] sm:$0xff]
      %vm454 = vcmask 261120
      %v455 = vsel %vm454, %v452, 0.0
      %456 = vadd.xlane.f32.xlu0 %v455
      %v457 = vpop.xlane.xlu0 %456
      %v458 = vrcp.pop 32.0
      %v459 = vmul.f32 %v457, %v458
      %v460 = vsub.f32 %v452, %v459
      %v461 = vmul.f32 %v460, %v460
      %v462 = vsel %vm454, %v461, 0.0
      %463 = vadd.xlane.f32.xlu0 %v462
      %v464 = vpop.xlane.xlu0 %463
      %v465 = vmul.f32 %v464, %v458
      %v466 = vadd.f32 %v465, 1e-05
      %v467 = vrsqrt.pop %v466
      %v468 = vmul.f32 %v460, %v467
      %v469 = vlaneseq
      %v470 = vshrl.u32 %v469, 7
      %v471 = vsub.s32 0, %v470
      %v472 = vrot.slane %v453, %v471
      %v473 = vmul.f32 %v468, %v472
      %v474 = vlaneseq
      %v475 = vshrl.u32 %v474, 7
      %v476 = vsub.s32 1, %v475
      %v477 = vrot.slane %v453, %v476
      %v478 = vadd.f32 %v473, %v477
      %v479 = vpack.c.bf16 %v478, %v478
      %v480 = vld [vmem:[%s412] sm:$0xf]
      %v481 = vld [vmem:[%s412 + $0x4] sm:$0xf]
      %v482 = vld [vmem:[%s412 + $0x8] sm:$0xf]
      %v483 = vld [vmem:[%s412 + $0xc] sm:$0xf]
      %v484 = vld [vmem:[%s415] sm:$0x1]
      %v486 = vlaneseq
      %v487 = vshrl.u32 %v486, 7
      %v488 = vsub.s32 0, %v487
      %v489 = vrot.slane %v484, %v488
      %v495 = vunpack.c.l.b16 %v480
      %v496 = vunpack.c.l.b16 %v481
      %v497 = vunpack.c.l.b16 %v482
      %v498 = vunpack.c.l.b16 %v483
      %v499 = vpack.c.b16 %v496, %v495
      %v500 = vpack.c.b16 %v498, %v497
      %v504 = vsel %vm454, %v479, 0
      %506 = vmatprep.subr.bf16.mxu0 0
      %507 = vmatpush1.bf16.msra.mxu0 %v499
      %508 = vmatprep.subr.bf16.mxu0 0
      %509 = vmatpush1.bf16.msra.mxu0 %v500
      %510 = vmatprep.subr.bf16.mxu0 0
      %511 = vmatpush1.bf16.msra.mxu0 0
      %512 = vmatprep.subr.bf16.mxu0 0
      %513 = vmatpush1.bf16.msra.mxu0 0
      %514 = vmatprep.subr.bf16.mxu0 0
      %515 = vmatpush1.bf16.msra.mxu0 0
      %516 = vmatprep.subr.bf16.mxu0 0
      %517 = vmatpush1.bf16.msra.mxu0 0
      %518 = vmatprep.subr.bf16.mxu0 0
      %519 = vmatpush1.bf16.msra.mxu0 0
      %520 = vmatprep.subr.bf16.mxu0 0
      %521 = vmatpush1.bf16.msra.mxu0 0
      %522 = vmatprep.subr.bf16.mxu0 0
      %523 = vmatpush1.bf16.msra.mxu0 0
      %524 = vmatprep.subr.bf16.mxu0 0
      %525 = vmatpush1.bf16.msra.mxu0 0
      %526 = vmatprep.subr.bf16.mxu0 0
      %527 = vmatpush1.bf16.msra.mxu0 0
      %528 = vmatprep.subr.bf16.mxu0 0
      %529 = vmatpush1.bf16.msra.mxu0 0
      %530 = vmatprep.subr.bf16.mxu0 0
      %531 = vmatpush1.bf16.msra.mxu0 0
      %532 = vmatprep.subr.bf16.mxu0 0
      %533 = vmatpush1.bf16.msra.mxu0 0
      %534 = vmatprep.subr.bf16.mxu0 0
      %535 = vmatpush1.bf16.msra.mxu0 0
      %536 = vmatprep.subr.bf16.mxu0 0
      %537 = vmatpush1.bf16.msra.mxu0 0
      %538 = vmatprep.mubr.bf16.mxu0 0
      %539 = vmatmul.mubr.bf16.gmra.mrb[0].mxu0 %v504
      %v540 = vpop.f32.mrb[0].mxu0
      %v541 = vadd.f32 %v489, %v540
      %v542 = vpop.f32.mrb[0].mxu0
      %v543 = vpop.f32.mrb[0].mxu0
      %v544 = vpop.f32.mrb[0].mxu0
      %545 = vdwg.mxu0
      %v546 = vpack.c.bf16 %v541, %v541
      %548 = vrot.lane.b32.xlu0 %v546, 96
      %v549 = vpop.permute.xlu0 %548
      %vm550 = vcmask 64512
      %v552 = vsel %vm550, %v546, 0
      %v555 = vsel %vm550, %v549, 0
      %557 = vmatprep.subr.bf16.mxu0 0
      %558 = vmatpush1.bf16.xpose.msra.mxu0 %v555
      %559 = vmatprep.subr.bf16.mxu0 0
      %560 = vmatpush1.bf16.xpose.msra.mxu0 0
      %561 = vmatprep.subr.bf16.mxu0 0
      %562 = vmatpush1.bf16.xpose.msra.mxu0 0
      %563 = vmatprep.subr.bf16.mxu0 0
      %564 = vmatpush1.bf16.xpose.msra.mxu0 0
      %565 = vmatprep.subr.bf16.mxu0 0
      %566 = vmatpush1.bf16.xpose.msra.mxu0 0
      %567 = vmatprep.subr.bf16.mxu0 0
      %568 = vmatpush1.bf16.xpose.msra.mxu0 0
      %569 = vmatprep.subr.bf16.mxu0 0
      %570 = vmatpush1.bf16.xpose.msra.mxu0 0
      %571 = vmatprep.subr.bf16.mxu0 0
      %572 = vmatpush1.bf16.xpose.msra.mxu0 0
      %573 = vmatprep.subr.bf16.mxu0 0
      %574 = vmatpush1.bf16.xpose.msra.mxu0 0
      %575 = vmatprep.subr.bf16.mxu0 0
      %576 = vmatpush1.bf16.xpose.msra.mxu0 0
      %577 = vmatprep.subr.bf16.mxu0 0
      %578 = vmatpush1.bf16.xpose.msra.mxu0 0
      %579 = vmatprep.subr.bf16.mxu0 0
      %580 = vmatpush1.bf16.xpose.msra.mxu0 0
      %581 = vmatprep.subr.bf16.mxu0 0
      %582 = vmatpush1.bf16.xpose.msra.mxu0 0
      %583 = vmatprep.subr.bf16.mxu0 0
      %584 = vmatpush1.bf16.xpose.msra.mxu0 0
      %585 = vmatprep.subr.bf16.mxu0 0
      %586 = vmatpush1.bf16.xpose.msra.mxu0 0
      %587 = vmatprep.subr.bf16.mxu0 0
      %588 = vmatpush1.bf16.xpose.msra.mxu0 0
      %589 = vmatprep.mubr.bf16.mxu0 0
      %590 = vmatmul.mubr.bf16.gmra.mrb[0].mxu0 %v552
      %v591 = vpop.f32.mrb[0].mxu0
      %v592 = vadd.f32 0.0, %v591
      %v593 = vpop.f32.mrb[0].mxu0
      %v594 = vpop.f32.mrb[0].mxu0
      %v595 = vpop.f32.mrb[0].mxu0
      %596 = vdwg.mxu0
      %v597 = vmul.f32 %v592, 0.35355338
      %v598 = vld [vmem:[#allocation2] sm:$0xff]
      %v599 = vadd.f32 %v597, %v598
      %v600 = vsel %vm550, %v599, -inf
      %601 = vmax.xlane.f32.xlu0 %v600
      %v602 = vpop.xlane.xlu0 %601
      %v603 = vsub.f32 %v599, %v602
      %v604 = vmul.f32 %v603, 1.442695
      %v605 = vpow.pop %v604
      %v606 = vsel %vm550, %v605, 0.0
      %607 = vadd.xlane.f32.xlu0 %v606
      %v608 = vpop.xlane.xlu0 %607
      %v609 = vrcp.pop %v608
      %v610 = vmul.f32 %v605, %v609
      %v611 = vpack.c.bf16 %v610, %v610
      %612 = vrot.lane.b32.xlu0 %v546, 64
      %v613 = vpop.permute.xlu0 %612
      %v615 = vsel %vm550, %v611, 0
      %vm617 = vcmask 1043456
      %v619 = vsel %vm617, %v613, 0
      %621 = vmatprep.subr.bf16.mxu0 0
      %622 = vmatpush1.bf16.msra.mxu0 %v619
      %623 = vmatprep.subr.bf16.mxu0 0
      %624 = vmatpush1.bf16.msra.mxu0 0
      %625 = vmatprep.subr.bf16.mxu0 0
      %626 = vmatpush1.bf16.msra.mxu0 0
      %627 = vmatprep.subr.bf16.mxu0 0
      %628 = vmatpush1.bf16.msra.mxu0 0
      %629 = vmatprep.subr.bf16.mxu0 0
      %630 = vmatpush1.bf16.msra.mxu0 0
      %631 = vmatprep.subr.bf16.mxu0 0
      %632 = vmatpush1.bf16.msra.mxu0 0
      %633 = vmatprep.subr.bf16.mxu0 0
      %634 = vmatpush1.bf16.msra.mxu0 0
      %635 = vmatprep.subr.bf16.mxu0 0
      %636 = vmatpush1.bf16.msra.mxu0 0
      %637 = vmatprep.subr.bf16.mxu0 0
      %638 = vmatpush1.bf16.msra.mxu0 0
      %639 = vmatprep.subr.bf16.mxu0 0
      %640 = vmatpush1.bf16.msra.mxu0 0
      %641 = vmatprep.subr.bf16.mxu0 0
      %642 = vmatpush1.bf16.msra.mxu0 0
      %643 = vmatprep.subr.bf16.mxu0 0
      %644 = vmatpush1.bf16.msra.mxu0 0
      %645 = vmatprep.subr.bf16.mxu0 0
      %646 = vmatpush1.bf16.msra.mxu0 0
      %647 = vmatprep.subr.bf16.mxu0 0
      %648 = vmatpush1.bf16.msra.mxu0 0
      %649 = vmatprep.subr.bf16.mxu0 0
      %650 = vmatpush1.bf16.msra.mxu0 0
      %651 = vmatprep.subr.bf16.mxu0 0
      %652 = vmatpush1.bf16.msra.mxu0 0
      %653 = vmatprep.mubr.bf16.mxu0 0
      %654 = vmatmul.mubr.bf16.gmra.mrb[0].mxu0 %v615
      %v655 = vpop.f32.mrb[0].mxu0
      %v656 = vadd.f32 0.0, %v655
      %v657 = vpop.f32.mrb[0].mxu0
      %v658 = vpop.f32.mrb[0].mxu0
      %v659 = vpop.f32.mrb[0].mxu0
      %660 = vdwg.mxu0
      %661 = vrot.lane.b32.xlu0 %v546, 120
      %v662 = vpop.permute.xlu0 %661
      %663 = vrot.lane.b32.xlu0 %v546, 88
      %v664 = vpop.permute.xlu0 %663
      %v666 = vsel %vm550, %v662, 0
      %v669 = vsel %vm550, %v664, 0
      %671 = vmatprep.subr.bf16.mxu0 0
      %672 = vmatpush1.bf16.xpose.msra.mxu0 %v669
      %673 = vmatprep.subr.bf16.mxu0 0
      %674 = vmatpush1.bf16.xpose.msra.mxu0 0
      %675 = vmatprep.subr.bf16.mxu0 0
      %676 = vmatpush1.bf16.xpose.msra.mxu0 0
      %677 = vmatprep.subr.bf16.mxu0 0
      %678 = vmatpush1.bf16.xpose.msra.mxu0 0
      %679 = vmatprep.subr.bf16.mxu0 0
      %680 = vmatpush1.bf16.xpose.msra.mxu0 0
      %681 = vmatprep.subr.bf16.mxu0 0
      %682 = vmatpush1.bf16.xpose.msra.mxu0 0
      %683 = vmatprep.subr.bf16.mxu0 0
      %684 = vmatpush1.bf16.xpose.msra.mxu0 0
      %685 = vmatprep.subr.bf16.mxu0 0
      %686 = vmatpush1.bf16.xpose.msra.mxu0 0
      %687 = vmatprep.subr.bf16.mxu0 0
      %688 = vmatpush1.bf16.xpose.msra.mxu0 0
      %689 = vmatprep.subr.bf16.mxu0 0
      %690 = vmatpush1.bf16.xpose.msra.mxu0 0
      %691 = vmatprep.subr.bf16.mxu0 0
      %692 = vmatpush1.bf16.xpose.msra.mxu0 0
      %693 = vmatprep.subr.bf16.mxu0 0
      %694 = vmatpush1.bf16.xpose.msra.mxu0 0
      %695 = vmatprep.subr.bf16.mxu0 0
      %696 = vmatpush1.bf16.xpose.msra.mxu0 0
      %697 = vmatprep.subr.bf16.mxu0 0
      %698 = vmatpush1.bf16.xpose.msra.mxu0 0
      %699 = vmatprep.subr.bf16.mxu0 0
      %700 = vmatpush1.bf16.xpose.msra.mxu0 0
      %701 = vmatprep.subr.bf16.mxu0 0
      %702 = vmatpush1.bf16.xpose.msra.mxu0 0
      %703 = vmatprep.mubr.bf16.mxu0 0
      %704 = vmatmul.mubr.bf16.gmra.mrb[0].mxu0 %v666
      %v705 = vpop.f32.mrb[0].mxu0
      %v706 = vadd.f32 0.0, %v705
      %v707 = vpop.f32.mrb[0].mxu0
      %v708 = vpop.f32.mrb[0].mxu0
      %v709 = vpop.f32.mrb[0].mxu0
      %710 = vdwg.mxu0
      %v711 = vmul.f32 %v706, 0.35355338
      %v712 = vld [vmem:[#allocation2] sm:$0xff]
      %v713 = vadd.f32 %v711, %v712
      %v714 = vsel %vm550, %v713, -inf
      %715 = vmax.xlane.f32.xlu0 %v714
      %v716 = vpop.xlane.xlu0 %715
      %v717 = vsub.f32 %v713, %v716
      %v718 = vmul.f32 %v717, 1.442695
      %v719 = vpow.pop %v718
      %v720 = vsel %vm550, %v719, 0.0
      %721 = vadd.xlane.f32.xlu0 %v720
      %v722 = vpop.xlane.xlu0 %721
      %v723 = vrcp.pop %v722
      %v724 = vmul.f32 %v719, %v723
      %v725 = vpack.c.bf16 %v724, %v724
      %726 = vrot.lane.b32.xlu0 %v546, 56
      %v727 = vpop.permute.xlu0 %726
      %v729 = vsel %vm550, %v725, 0
      %v732 = vsel %vm617, %v727, 0
      %734 = vmatprep.subr.bf16.mxu0 0
      %735 = vmatpush1.bf16.msra.mxu0 %v732
      %736 = vmatprep.subr.bf16.mxu0 0
      %737 = vmatpush1.bf16.msra.mxu0 0
      %738 = vmatprep.subr.bf16.mxu0 0
      %739 = vmatpush1.bf16.msra.mxu0 0
      %740 = vmatprep.subr.bf16.mxu0 0
      %741 = vmatpush1.bf16.msra.mxu0 0
      %742 = vmatprep.subr.bf16.mxu0 0
      %743 = vmatpush1.bf16.msra.mxu0 0
      %744 = vmatprep.subr.bf16.mxu0 0
      %745 = vmatpush1.bf16.msra.mxu0 0
      %746 = vmatprep.subr.bf16.mxu0 0
      %747 = vmatpush1.bf16.msra.mxu0 0
      %748 = vmatprep.subr.bf16.mxu0 0
      %749 = vmatpush1.bf16.msra.mxu0 0
      %750 = vmatprep.subr.bf16.mxu0 0
      %751 = vmatpush1.bf16.msra.mxu0 0
      %752 = vmatprep.subr.bf16.mxu0 0
      %753 = vmatpush1.bf16.msra.mxu0 0
      %754 = vmatprep.subr.bf16.mxu0 0
      %755 = vmatpush1.bf16.msra.mxu0 0
      %756 = vmatprep.subr.bf16.mxu0 0
      %757 = vmatpush1.bf16.msra.mxu0 0
      %758 = vmatprep.subr.bf16.mxu0 0
      %759 = vmatpush1.bf16.msra.mxu0 0
      %760 = vmatprep.subr.bf16.mxu0 0
      %761 = vmatpush1.bf16.msra.mxu0 0
      %762 = vmatprep.subr.bf16.mxu0 0
      %763 = vmatpush1.bf16.msra.mxu0 0
      %764 = vmatprep.subr.bf16.mxu0 0
      %765 = vmatpush1.bf16.msra.mxu0 0
      %766 = vmatprep.mubr.bf16.mxu0 0
      %767 = vmatmul.mubr.bf16.gmra.mrb[0].mxu0 %v729
      %v768 = vpop.f32.mrb[0].mxu0
      %v769 = vadd.f32 0.0, %v768
      %v770 = vpop.f32.mrb[0].mxu0
      %v771 = vpop.f32.mrb[0].mxu0
      %v772 = vpop.f32.mrb[0].mxu0
      %773 = vdwg.mxu0
      %774 = vrot.lane.b32.xlu0 %v546, 112
      %v775 = vpop.permute.xlu0 %774
      %776 = vrot.lane.b32.xlu0 %v546, 80
      %v777 = vpop.permute.xlu0 %776
      %v779 = vsel %vm550, %v775, 0
      %v782 = vsel %vm550, %v777, 0
      %784 = vmatprep.subr.bf16.mxu0 0
      %785 = vmatpush1.bf16.xpose.msra.mxu0 %v782
      %786 = vmatprep.subr.bf16.mxu0 0
      %787 = vmatpush1.bf16.xpose.msra.mxu0 0
      %788 = vmatprep.subr.bf16.mxu0 0
      %789 = vmatpush1.bf16.xpose.msra.mxu0 0
      %790 = vmatprep.subr.bf16.mxu0 0
      %791 = vmatpush1.bf16.xpose.msra.mxu0 0
      %792 = vmatprep.subr.bf16.mxu0 0
      %793 = vmatpush1.bf16.xpose.msra.mxu0 0
      %794 = vmatprep.subr.bf16.mxu0 0
      %795 = vmatpush1.bf16.xpose.msra.mxu0 0
      %796 = vmatprep.subr.bf16.mxu0 0
      %797 = vmatpush1.bf16.xpose.msra.mxu0 0
      %798 = vmatprep.subr.bf16.mxu0 0
      %799 = vmatpush1.bf16.xpose.msra.mxu0 0
      %800 = vmatprep.subr.bf16.mxu0 0
      %801 = vmatpush1.bf16.xpose.msra.mxu0 0
      %802 = vmatprep.subr.bf16.mxu0 0
      %803 = vmatpush1.bf16.xpose.msra.mxu0 0
      %804 = vmatprep.subr.bf16.mxu0 0
      %805 = vmatpush1.bf16.xpose.msra.mxu0 0
      %806 = vmatprep.subr.bf16.mxu0 0
      %807 = vmatpush1.bf16.xpose.msra.mxu0 0
      %808 = vmatprep.subr.bf16.mxu0 0
      %809 = vmatpush1.bf16.xpose.msra.mxu0 0
      %810 = vmatprep.subr.bf16.mxu0 0
      %811 = vmatpush1.bf16.xpose.msra.mxu0 0
      %812 = vmatprep.subr.bf16.mxu0 0
      %813 = vmatpush1.bf16.xpose.msra.mxu0 0
      %814 = vmatprep.subr.bf16.mxu0 0
      %815 = vmatpush1.bf16.xpose.msra.mxu0 0
      %816 = vmatprep.mubr.bf16.mxu0 0
      %817 = vmatmul.mubr.bf16.gmra.mrb[0].mxu0 %v779
      %v818 = vpop.f32.mrb[0].mxu0
      %v819 = vadd.f32 0.0, %v818
      %v820 = vpop.f32.mrb[0].mxu0
      %v821 = vpop.f32.mrb[0].mxu0
      %v822 = vpop.f32.mrb[0].mxu0
      %823 = vdwg.mxu0
      %v824 = vmul.f32 %v819, 0.35355338
      %v825 = vld [vmem:[#allocation2] sm:$0xff]
      %v826 = vadd.f32 %v824, %v825
      %v827 = vsel %vm550, %v826, -inf
      %828 = vmax.xlane.f32.xlu0 %v827
      %v829 = vpop.xlane.xlu0 %828
      %v830 = vsub.f32 %v826, %v829
      %v831 = vmul.f32 %v830, 1.442695
      %v832 = vpow.pop %v831
      %v833 = vsel %vm550, %v832, 0.0
      %834 = vadd.xlane.f32.xlu0 %v833
      %v835 = vpop.xlane.xlu0 %834
      %v836 = vrcp.pop %v835
      %v837 = vmul.f32 %v832, %v836
      %v838 = vpack.c.bf16 %v837, %v837
      %839 = vrot.lane.b32.xlu0 %v546, 48
      %v840 = vpop.permute.xlu0 %839
      %v842 = vsel %vm550, %v838, 0
      %v845 = vsel %vm617, %v840, 0
      %847 = vmatprep.subr.bf16.mxu0 0
      %848 = vmatpush1.bf16.msra.mxu0 %v845
      %849 = vmatprep.subr.bf16.mxu0 0
      %850 = vmatpush1.bf16.msra.mxu0 0
      %851 = vmatprep.subr.bf16.mxu0 0
      %852 = vmatpush1.bf16.msra.mxu0 0
      %853 = vmatprep.subr.bf16.mxu0 0
      %854 = vmatpush1.bf16.msra.mxu0 0
      %855 = vmatprep.subr.bf16.mxu0 0
      %856 = vmatpush1.bf16.msra.mxu0 0
      %857 = vmatprep.subr.bf16.mxu0 0
      %858 = vmatpush1.bf16.msra.mxu0 0
      %859 = vmatprep.subr.bf16.mxu0 0
      %860 = vmatpush1.bf16.msra.mxu0 0
      %861 = vmatprep.subr.bf16.mxu0 0
      %862 = vmatpush1.bf16.msra.mxu0 0
      %863 = vmatprep.subr.bf16.mxu0 0
      %864 = vmatpush1.bf16.msra.mxu0 0
      %865 = vmatprep.subr.bf16.mxu0 0
      %866 = vmatpush1.bf16.msra.mxu0 0
      %867 = vmatprep.subr.bf16.mxu0 0
      %868 = vmatpush1.bf16.msra.mxu0 0
      %869 = vmatprep.subr.bf16.mxu0 0
      %870 = vmatpush1.bf16.msra.mxu0 0
      %871 = vmatprep.subr.bf16.mxu0 0
      %872 = vmatpush1.bf16.msra.mxu0 0
      %873 = vmatprep.subr.bf16.mxu0 0
      %874 = vmatpush1.bf16.msra.mxu0 0
      %875 = vmatprep.subr.bf16.mxu0 0
      %876 = vmatpush1.bf16.msra.mxu0 0
      %877 = vmatprep.subr.bf16.mxu0 0
      %878 = vmatpush1.bf16.msra.mxu0 0
      %879 = vmatprep.mubr.bf16.mxu0 0
      %880 = vmatmul.mubr.bf16.gmra.mrb[0].mxu0 %v842
      %v881 = vpop.f32.mrb[0].mxu0
      %v882 = vadd.f32 0.0, %v881
      %v883 = vpop.f32.mrb[0].mxu0
      %v884 = vpop.f32.mrb[0].mxu0
      %v885 = vpop.f32.mrb[0].mxu0
      %886 = vdwg.mxu0
      %887 = vrot.lane.b32.xlu0 %v546, 104
      %v888 = vpop.permute.xlu0 %887
      %889 = vrot.lane.b32.xlu0 %v546, 72
      %v890 = vpop.permute.xlu0 %889
      %v892 = vsel %vm550, %v888, 0
      %v895 = vsel %vm550, %v890, 0
      %897 = vmatprep.subr.bf16.mxu0 0
      %898 = vmatpush1.bf16.xpose.msra.mxu0 %v895
      %899 = vmatprep.subr.bf16.mxu0 0
      %900 = vmatpush1.bf16.xpose.msra.mxu0 0
      %901 = vmatprep.subr.bf16.mxu0 0
      %902 = vmatpush1.bf16.xpose.msra.mxu0 0
      %903 = vmatprep.subr.bf16.mxu0 0
      %904 = vmatpush1.bf16.xpose.msra.mxu0 0
      %905 = vmatprep.subr.bf16.mxu0 0
      %906 = vmatpush1.bf16.xpose.msra.mxu0 0
      %907 = vmatprep.subr.bf16.mxu0 0
      %908 = vmatpush1.bf16.xpose.msra.mxu0 0
      %909 = vmatprep.subr.bf16.mxu0 0
      %910 = vmatpush1.bf16.xpose.msra.mxu0 0
      %911 = vmatprep.subr.bf16.mxu0 0
      %912 = vmatpush1.bf16.xpose.msra.mxu0 0
      %913 = vmatprep.subr.bf16.mxu0 0
      %914 = vmatpush1.bf16.xpose.msra.mxu0 0
      %915 = vmatprep.subr.bf16.mxu0 0
      %916 = vmatpush1.bf16.xpose.msra.mxu0 0
      %917 = vmatprep.subr.bf16.mxu0 0
      %918 = vmatpush1.bf16.xpose.msra.mxu0 0
      %919 = vmatprep.subr.bf16.mxu0 0
      %920 = vmatpush1.bf16.xpose.msra.mxu0 0
      %921 = vmatprep.subr.bf16.mxu0 0
      %922 = vmatpush1.bf16.xpose.msra.mxu0 0
      %923 = vmatprep.subr.bf16.mxu0 0
      %924 = vmatpush1.bf16.xpose.msra.mxu0 0
      %925 = vmatprep.subr.bf16.mxu0 0
      %926 = vmatpush1.bf16.xpose.msra.mxu0 0
      %927 = vmatprep.subr.bf16.mxu0 0
      %928 = vmatpush1.bf16.xpose.msra.mxu0 0
      %929 = vmatprep.mubr.bf16.mxu0 0
      %930 = vmatmul.mubr.bf16.gmra.mrb[0].mxu0 %v892
      %v931 = vpop.f32.mrb[0].mxu0
      %v932 = vadd.f32 0.0, %v931
      %v933 = vpop.f32.mrb[0].mxu0
      %v934 = vpop.f32.mrb[0].mxu0
      %v935 = vpop.f32.mrb[0].mxu0
      %936 = vdwg.mxu0
      %v937 = vmul.f32 %v932, 0.35355338
      %v938 = vld [vmem:[#allocation2] sm:$0xff]
      %v939 = vadd.f32 %v937, %v938
      %v940 = vsel %vm550, %v939, -inf
      %941 = vmax.xlane.f32.xlu0 %v940
      %v942 = vpop.xlane.xlu0 %941
      %v943 = vsub.f32 %v939, %v942
      %v944 = vmul.f32 %v943, 1.442695
      %v945 = vpow.pop %v944
      %v946 = vsel %vm550, %v945, 0.0
      %947 = vadd.xlane.f32.xlu0 %v946
      %v948 = vpop.xlane.xlu0 %947
      %v949 = vrcp.pop %v948
      %v950 = vmul.f32 %v945, %v949
      %v951 = vpack.c.bf16 %v950, %v950
      %952 = vrot.lane.b32.xlu0 %v546, 40
      %v953 = vpop.permute.xlu0 %952
      %v955 = vsel %vm550, %v951, 0
      %v958 = vsel %vm617, %v953, 0
      %960 = vmatprep.subr.bf16.mxu0 0
      %961 = vmatpush1.bf16.msra.mxu0 %v958
      %962 = vmatprep.subr.bf16.mxu0 0
      %963 = vmatpush1.bf16.msra.mxu0 0
      %964 = vmatprep.subr.bf16.mxu0 0
      %965 = vmatpush1.bf16.msra.mxu0 0
      %966 = vmatprep.subr.bf16.mxu0 0
      %967 = vmatpush1.bf16.msra.mxu0 0
      %968 = vmatprep.subr.bf16.mxu0 0
      %969 = vmatpush1.bf16.msra.mxu0 0
      %970 = vmatprep.subr.bf16.mxu0 0
      %971 = vmatpush1.bf16.msra.mxu0 0
      %972 = vmatprep.subr.bf16.mxu0 0
      %973 = vmatpush1.bf16.msra.mxu0 0
      %974 = vmatprep.subr.bf16.mxu0 0
      %975 = vmatpush1.bf16.msra.mxu0 0
      %976 = vmatprep.subr.bf16.mxu0 0
      %977 = vmatpush1.bf16.msra.mxu0 0
      %978 = vmatprep.subr.bf16.mxu0 0
      %979 = vmatpush1.bf16.msra.mxu0 0
      %980 = vmatprep.subr.bf16.mxu0 0
      %981 = vmatpush1.bf16.msra.mxu0 0
      %982 = vmatprep.subr.bf16.mxu0 0
      %983 = vmatpush1.bf16.msra.mxu0 0
      %984 = vmatprep.subr.bf16.mxu0 0
      %985 = vmatpush1.bf16.msra.mxu0 0
      %986 = vmatprep.subr.bf16.mxu0 0
      %987 = vmatpush1.bf16.msra.mxu0 0
      %988 = vmatprep.subr.bf16.mxu0 0
      %989 = vmatpush1.bf16.msra.mxu0 0
      %990 = vmatprep.subr.bf16.mxu0 0
      %991 = vmatpush1.bf16.msra.mxu0 0
      %992 = vmatprep.mubr.bf16.mxu0 0
      %993 = vmatmul.mubr.bf16.gmra.mrb[0].mxu0 %v955
      %v994 = vpop.f32.mrb[0].mxu0
      %v995 = vadd.f32 0.0, %v994
      %v996 = vpop.f32.mrb[0].mxu0
      %v997 = vpop.f32.mrb[0].mxu0
      %v998 = vpop.f32.mrb[0].mxu0
      %999 = vdwg.mxu0
      %1001 = vrot.lane.b32.xlu0 %v769, 8
      %v1002 = vpop.permute.xlu0 %1001
      %1005 = vrot.lane.b32.xlu0 %v882, 16
      %v1006 = vpop.permute.xlu0 %1005
      %1009 = vrot.lane.b32.xlu0 %v995, 24
      %v1010 = vpop.permute.xlu0 %1009
      %v1012 = vsel %vm550, %v656, %v1002
      %vm1013 = vcmask 130048
      %v1014 = vsel %vm1013, %v1012, %v1006
      %vm1015 = vcmask 195584
      %v1016 = vsel %vm1015, %v1014, %v1010
      %v1017 = vpack.c.bf16 %v1016, %v1016
      %v1018 = vld [vmem:[%s420] sm:$0xf]
      %v1019 = vld [vmem:[%s420 + $0x4] sm:$0xf]
      %v1020 = vld [vmem:[%s420 + $0x8] sm:$0xf]
      %v1021 = vld [vmem:[%s420 + $0xc] sm:$0xf]
      %v1022 = vlaneseq
      %v1023 = vshrl.u32 %v1022, 7
      %v1024 = vsub.s32 4, %v1023
      %v1025 = vrot.slane %v453, %v1024
      %v1030 = vunpack.c.l.b16 %v1018
      %v1031 = vunpack.c.l.b16 %v1019
      %v1032 = vunpack.c.l.b16 %v1020
      %v1033 = vunpack.c.l.b16 %v1021
      %v1034 = vpack.c.b16 %v1031, %v1030
      %v1035 = vpack.c.b16 %v1033, %v1032
      %v1039 = vsel %vm454, %v1017, 0
      %1041 = vmatprep.subr.bf16.mxu0 0
      %1042 = vmatpush1.bf16.msra.mxu0 %v1034
      %1043 = vmatprep.subr.bf16.mxu0 0
      %1044 = vmatpush1.bf16.msra.mxu0 %v1035
      %1045 = vmatprep.subr.bf16.mxu0 0
      %1046 = vmatpush1.bf16.msra.mxu0 0
      %1047 = vmatprep.subr.bf16.mxu0 0
      %1048 = vmatpush1.bf16.msra.mxu0 0
      %1049 = vmatprep.subr.bf16.mxu0 0
      %1050 = vmatpush1.bf16.msra.mxu0 0
      %1051 = vmatprep.subr.bf16.mxu0 0
      %1052 = vmatpush1.bf16.msra.mxu0 0
      %1053 = vmatprep.subr.bf16.mxu0 0
      %1054 = vmatpush1.bf16.msra.mxu0 0
      %1055 = vmatprep.subr.bf16.mxu0 0
      %1056 = vmatpush1.bf16.msra.mxu0 0
      %1057 = vmatprep.subr.bf16.mxu0 0
      %1058 = vmatpush1.bf16.msra.mxu0 0
      %1059 = vmatprep.subr.bf16.mxu0 0
      %1060 = vmatpush1.bf16.msra.mxu0 0
      %1061 = vmatprep.subr.bf16.mxu0 0
      %1062 = vmatpush1.bf16.msra.mxu0 0
      %1063 = vmatprep.subr.bf16.mxu0 0
      %1064 = vmatpush1.bf16.msra.mxu0 0
      %1065 = vmatprep.subr.bf16.mxu0 0
      %1066 = vmatpush1.bf16.msra.mxu0 0
      %1067 = vmatprep.subr.bf16.mxu0 0
      %1068 = vmatpush1.bf16.msra.mxu0 0
      %1069 = vmatprep.subr.bf16.mxu0 0
      %1070 = vmatpush1.bf16.msra.mxu0 0
      %1071 = vmatprep.subr.bf16.mxu0 0
      %1072 = vmatpush1.bf16.msra.mxu0 0
      %1073 = vmatprep.mubr.bf16.mxu0 0
      %1074 = vmatmul.mubr.bf16.gmra.mrb[0].mxu0 %v1039
      %v1075 = vpop.f32.mrb[0].mxu0
      %v1076 = vadd.f32 %v1025, %v1075
      %v1077 = vpop.f32.mrb[0].mxu0
      %v1078 = vpop.f32.mrb[0].mxu0
      %v1079 = vpop.f32.mrb[0].mxu0
      %1080 = vdwg.mxu0
      %v1081 = vadd.f32 %v452, %v1076
      %v1082 = vsel %vm454, %v1081, 0.0
      %1083 = vadd.xlane.f32.xlu0 %v1082
      %v1084 = vpop.xlane.xlu0 %1083
      %v1085 = vmul.f32 %v1084, %v458
      %v1086 = vsub.f32 %v1081, %v1085
      %v1087 = vmul.f32 %v1086, %v1086
      %v1088 = vsel %vm454, %v1087, 0.0
      %1089 = vadd.xlane.f32.xlu0 %v1088
      %v1090 = vpop.xlane.xlu0 %1089
      %v1091 = vmul.f32 %v1090, %v458
      %v1092 = vadd.f32 %v1091, 1e-05
      %v1093 = vrsqrt.pop %v1092
      %v1094 = vmul.f32 %v1086, %v1093
      %v1095 = vlaneseq
      %v1096 = vshrl.u32 %v1095, 7
      %v1097 = vsub.s32 2, %v1096
      %v1098 = vrot.slane %v453, %v1097
      %v1099 = vmul.f32 %v1094, %v1098
      %v1100 = vlaneseq
      %v1101 = vshrl.u32 %v1100, 7
      %v1102 = vsub.s32 3, %v1101
      %v1103 = vrot.slane %v453, %v1102
      %v1104 = vadd.f32 %v1099, %v1103
      %v1105 = vpack.c.bf16 %v1104, %v1104
      %v1106 = vld [vmem:[%s425] sm:$0xf]
      %v1107 = vld [vmem:[%s425 + $0x4] sm:$0xf]
      %v1108 = vld [vmem:[%s425 + $0x8] sm:$0xf]
      %v1109 = vld [vmem:[%s425 + $0xc] sm:$0xf]
      %v1110 = vld [vmem:[%s428] sm:$0x1]
      %v1112 = vlaneseq
      %v1113 = vshrl.u32 %v1112, 7
      %v1114 = vsub.s32 0, %v1113
      %v1115 = vrot.slane %v1110, %v1114
      %v1121 = vunpack.c.l.b16 %v1106
      %v1122 = vunpack.c.l.b16 %v1107
      %v1123 = vunpack.c.l.b16 %v1108
      %v1124 = vunpack.c.l.b16 %v1109
      %v1125 = vpack.c.b16 %v1122, %v1121
      %v1126 = vpack.c.b16 %v1124, %v1123
      %v1130 = vsel %vm454, %v1105, 0
      %1132 = vmatprep.subr.bf16.mxu0 0
      %1133 = vmatpush1.bf16.msra.mxu0 %v1125
      %1134 = vmatprep.subr.bf16.mxu0 0
      %1135 = vmatpush1.bf16.msra.mxu0 %v1126
      %1136 = vmatprep.subr.bf16.mxu0 0
      %1137 = vmatpush1.bf16.msra.mxu0 0
      %1138 = vmatprep.subr.bf16.mxu0 0
      %1139 = vmatpush1.bf16.msra.mxu0 0
      %1140 = vmatprep.subr.bf16.mxu0 0
      %1141 = vmatpush1.bf16.msra.mxu0 0
      %1142 = vmatprep.subr.bf16.mxu0 0
      %1143 = vmatpush1.bf16.msra.mxu0 0
      %1144 = vmatprep.subr.bf16.mxu0 0
      %1145 = vmatpush1.bf16.msra.mxu0 0
      %1146 = vmatprep.subr.bf16.mxu0 0
      %1147 = vmatpush1.bf16.msra.mxu0 0
      %1148 = vmatprep.subr.bf16.mxu0 0
      %1149 = vmatpush1.bf16.msra.mxu0 0
      %1150 = vmatprep.subr.bf16.mxu0 0
      %1151 = vmatpush1.bf16.msra.mxu0 0
      %1152 = vmatprep.subr.bf16.mxu0 0
      %1153 = vmatpush1.bf16.msra.mxu0 0
      %1154 = vmatprep.subr.bf16.mxu0 0
      %1155 = vmatpush1.bf16.msra.mxu0 0
      %1156 = vmatprep.subr.bf16.mxu0 0
      %1157 = vmatpush1.bf16.msra.mxu0 0
      %1158 = vmatprep.subr.bf16.mxu0 0
      %1159 = vmatpush1.bf16.msra.mxu0 0
      %1160 = vmatprep.subr.bf16.mxu0 0
      %1161 = vmatpush1.bf16.msra.mxu0 0
      %1162 = vmatprep.subr.bf16.mxu0 0
      %1163 = vmatpush1.bf16.msra.mxu0 0
      %1164 = vmatprep.mubr.bf16.mxu0 0
      %1165 = vmatmul.mubr.bf16.gmra.mrb[0].mxu0 %v1130
      %v1166 = vpop.f32.mrb[0].mxu0
      %v1167 = vadd.f32 %v1115, %v1166
      %v1168 = vpop.f32.mrb[0].mxu0
      %v1169 = vpop.f32.mrb[0].mxu0
      %v1170 = vpop.f32.mrb[0].mxu0
      %1171 = vdwg.mxu0
      %v1172 = vmul.f32 %v1167, %v1167
      %v1173 = vmul.f32 %v1167, %v1172
      %v1174 = vmul.f32 %v1173, 0.044715
      %v1175 = vadd.f32 %v1167, %v1174
      %v1176 = vmul.f32 %v1175, 0.7978846
      %v1177 = vtanh.pop %v1176
      %v1178 = vadd.f32 %v1177, 1.0
      %v1179 = vmul.f32 %v1178, 0.5
      %v1180 = vmul.f32 %v1167, %v1179
      %v1181 = vpack.c.bf16 %v1180, %v1180
      %v1182 = vld [vmem:[%s433] sm:$0xf]
      %v1183 = vld [vmem:[%s433 + $0x4] sm:$0xf]
      %v1184 = vld [vmem:[%s433 + $0x8] sm:$0xf]
      %v1185 = vld [vmem:[%s433 + $0xc] sm:$0xf]
      %v1186 = vld [vmem:[%s433 + $0x10] sm:$0xf]
      %v1187 = vld [vmem:[%s433 + $0x14] sm:$0xf]
      %v1188 = vld [vmem:[%s433 + $0x18] sm:$0xf]
      %v1189 = vld [vmem:[%s433 + $0x1c] sm:$0xf]
      %v1190 = vlaneseq
      %v1191 = vshrl.u32 %v1190, 7
      %v1192 = vsub.s32 5, %v1191
      %v1193 = vrot.slane %v453, %v1192
      %v1202 = vunpack.c.l.b16 %v1182
      %v1203 = vunpack.c.l.b16 %v1183
      %v1204 = vunpack.c.l.b16 %v1184
      %v1205 = vunpack.c.l.b16 %v1185
      %v1206 = vunpack.c.l.b16 %v1186
      %v1207 = vunpack.c.l.b16 %v1187
      %v1208 = vunpack.c.l.b16 %v1188
      %v1209 = vunpack.c.l.b16 %v1189
      %v1210 = vpack.c.b16 %v1203, %v1202
      %v1211 = vpack.c.b16 %v1205, %v1204
      %v1212 = vpack.c.b16 %v1207, %v1206
      %v1213 = vpack.c.b16 %v1209, %v1208
      %vm1218 = vcmask 523264
      %v1220 = vsel %vm1218, %v1181, 0
      %1222 = vmatprep.subr.bf16.mxu0 0
      %1223 = vmatpush1.bf16.msra.mxu0 %v1210
      %1224 = vmatprep.subr.bf16.mxu0 0
      %1225 = vmatpush1.bf16.msra.mxu0 %v1211
      %1226 = vmatprep.subr.bf16.mxu0 0
      %1227 = vmatpush1.bf16.msra.mxu0 %v1212
      %1228 = vmatprep.subr.bf16.mxu0 0
      %1229 = vmatpush1.bf16.msra.mxu0 %v1213
      %1230 = vmatprep.subr.bf16.mxu0 0
      %1231 = vmatpush1.bf16.msra.mxu0 0
      %1232 = vmatprep.subr.bf16.mxu0 0
      %1233 = vmatpush1.bf16.msra.mxu0 0
      %1234 = vmatprep.subr.bf16.mxu0 0
      %1235 = vmatpush1.bf16.msra.mxu0 0
      %1236 = vmatprep.subr.bf16.mxu0 0
      %1237 = vmatpush1.bf16.msra.mxu0 0
      %1238 = vmatprep.subr.bf16.mxu0 0
      %1239 = vmatpush1.bf16.msra.mxu0 0
      %1240 = vmatprep.subr.bf16.mxu0 0
      %1241 = vmatpush1.bf16.msra.mxu0 0
      %1242 = vmatprep.subr.bf16.mxu0 0
      %1243 = vmatpush1.bf16.msra.mxu0 0
      %1244 = vmatprep.subr.bf16.mxu0 0
      %1245 = vmatpush1.bf16.msra.mxu0 0
      %1246 = vmatprep.subr.bf16.mxu0 0
      %1247 = vmatpush1.bf16.msra.mxu0 0
      %1248 = vmatprep.subr.bf16.mxu0 0
      %1249 = vmatpush1.bf16.msra.mxu0 0
      %1250 = vmatprep.subr.bf16.mxu0 0
      %1251 = vmatpush1.bf16.msra.mxu0 0
      %1252 = vmatprep.subr.bf16.mxu0 0
      %1253 = vmatpush1.bf16.msra.mxu0 0
      %1254 = vmatprep.mubr.bf16.mxu0 0
      %1255 = vmatmul.mubr.bf16.gmra.mrb[0].mxu0 %v1220
      %v1256 = vpop.f32.mrb[0].mxu0
      %v1257 = vadd.f32 %v1193, %v1256
      %v1258 = vpop.f32.mrb[0].mxu0
      %v1259 = vpop.f32.mrb[0].mxu0
      %v1260 = vpop.f32.mrb[0].mxu0
      %1261 = vdwg.mxu0
      %v1262 = vadd.f32 %v1081, %v1257
      %1263 = vst.msk [vmem:[%s437] sm:$0xff] %vm454, %v1262
      %p1264 = scmp.lt.s32.totalorder %s23, 0
      %s1265 = scalar_select %p1264, %s23, 0
      %s1266 = smul.addr %s1265, 8
      %s1267 = scalar_lea.vmem %s8, %s1266
      // Predicated region
      $region57: #{spatial_frame_features.3} parent=51 // pred_check
        %p1268 = pneg %p257
      $region58: #{spatial_frame_features.3} parent=51 // pred_check_branch
        %1270 = sbr.rel (%p1268) target = $region60
      $region59: #{spatial_frame_features.3} parent=51 // pred_region
        _
      $region60: #{spatial_frame_features.3} parent=51 // pred_fallthru
        _
      // Predicated region
      $region61: #{spatial_frame_features.3} parent=51 // pred_check
        %p1271 = pneg %p257
      $region62: #{spatial_frame_features.3} parent=51 // pred_check_branch
        %1273 = sbr.rel (%p1271) target = $region64
      $region63: #{spatial_frame_features.3} parent=51 // pred_region
        %p1274 = scmp.lt.s32.totalorder %s23, 0
        %s1275 = scalar_select %p1274, %s23, 0
        %s1276 = smul.addr %s1275, 8
        %s1277 = scalar_lea.vmem %s8, %s1276
      $region64: #{spatial_frame_features.3} parent=51 // pred_fallthru
        _
    $region52: #{spatial_frame_features.3} parent=5 // pred_fallthru
      _
    %p1278 = scmp.le.s32.totalorder 2, %s14
    // Predicated region
    $region65: #{spatial_frame_features.3} parent=5 // pred_check
      %p1279 = pneg %p1278
    $region66: #{spatial_frame_features.3} parent=5 // pred_check_branch
      %1281 = sbr.rel (%p1279) target = $region68
    $region67: #{spatial_frame_features.3} parent=5 // pred_region
      %s1282 = ssub.s32 %s14, 2
    $region68: #{spatial_frame_features.3} parent=5 // pred_fallthru
      _
  $region6: #{spatial_frame_features.3} parent=0 // loop_footer
    %s18 = sadd.s32 1, %s14
  $region7: #{spatial_frame_features.3} parent=0 // loop_footer_branch
    %13 = sbr.rel target = $region3
  $region8: #{spatial_frame_features.3} parent=0 // loop_exit
    _

// kernel: spatial_frame_features.2
$region0: #{spatial_frame_features.2}
  #allocation0 [shape = 'u32[]', space=smem, size = 0x4, offset = 0x4, fixed_abs, tag = 'smem constant byte address 0x4 - core index']
  #allocation1 [shape = 'u32[144,128]{1,0:T(1,128)}', space=vmem, size = 0x12000, scoped, tag = 'internal scratch']
  %s0 = inlined_call_operand.vmem [shape: bf16[8,640], index: 0, kind: input, shape index: {}]
  %s1 = inlined_call_operand.vmem [shape: bf16[640,32], index: 1, kind: input, shape index: {}]
  %s2 = inlined_call_operand.vmem [shape: f32[1,32], index: 2, kind: input, shape index: {}]
  %s3 = inlined_call_operand.vmem [shape: f32[8,32], index: 3, kind: output, shape index: {}]
  %s4 = sld [smem:[#allocation0]]
  $region22: #{spatial_frame_features.2} parent=0
    _
  %s6 = ssub.s32 1, %s4
  %s7 = scalar_select 0, %s6, %s4
  // Predicated region
  $region2: #{spatial_frame_features.2} parent=0 // pred_check
    _
  $region3: #{spatial_frame_features.2} parent=0 // pred_check_branch
    %9 = sbr.rel (0) target = $region5
  $region4: #{spatial_frame_features.2} parent=0 // pred_region
    _
  $region5: #{spatial_frame_features.2} parent=0 // pred_fallthru
    _
  // Predicated region
  $region6: #{spatial_frame_features.2} parent=0 // pred_check
    _
  $region7: #{spatial_frame_features.2} parent=0 // pred_check_branch
    %11 = sbr.rel (0) target = $region9
  $region8: #{spatial_frame_features.2} parent=0 // pred_region
    _
  $region9: #{spatial_frame_features.2} parent=0 // pred_fallthru
    _
  // Predicated region
  $region10: #{spatial_frame_features.2} parent=0 // pred_check
    _
  $region11: #{spatial_frame_features.2} parent=0 // pred_check_branch
    %13 = sbr.rel (0) target = $region13
  $region12: #{spatial_frame_features.2} parent=0 // pred_region
    _
  $region13: #{spatial_frame_features.2} parent=0 // pred_fallthru
    _
  %v15 = vld [vmem:[%s0] sm:$0xff]
  %v16 = vld [vmem:[%s0 + $0x8] sm:$0xff]
  %v17 = vld [vmem:[%s0 + $0x10] sm:$0xf]
  %v18 = vld [vmem:[%s1] sm:$0xf]
  %v19 = vld [vmem:[%s1 + $0x4] sm:$0xf]
  %v20 = vld [vmem:[%s1 + $0x8] sm:$0xf]
  %v21 = vld [vmem:[%s1 + $0xc] sm:$0xf]
  %v22 = vld [vmem:[%s1 + $0x10] sm:$0xf]
  %v23 = vld [vmem:[%s1 + $0x14] sm:$0xf]
  %v24 = vld [vmem:[%s1 + $0x18] sm:$0xf]
  %v25 = vld [vmem:[%s1 + $0x1c] sm:$0xf]
  %v26 = vld [vmem:[%s1 + $0x20] sm:$0xf]
  %v27 = vld [vmem:[%s1 + $0x24] sm:$0xf]
  %v28 = vld [vmem:[%s1 + $0x28] sm:$0xf]
  %v29 = vld [vmem:[%s1 + $0x2c] sm:$0xf]
  %v30 = vld [vmem:[%s1 + $0x30] sm:$0xf]
  %v31 = vld [vmem:[%s1 + $0x34] sm:$0xf]
  %v32 = vld [vmem:[%s1 + $0x38] sm:$0xf]
  %v33 = vld [vmem:[%s1 + $0x3c] sm:$0xf]
  %v34 = vld [vmem:[%s1 + $0x40] sm:$0xf]
  %v35 = vld [vmem:[%s1 + $0x44] sm:$0xf]
  %v36 = vld [vmem:[%s1 + $0x48] sm:$0xf]
  %v37 = vld [vmem:[%s1 + $0x4c] sm:$0xf]
  %v38 = vld [vmem:[%s1 + $0x50] sm:$0xf]
  %v39 = vld [vmem:[%s1 + $0x54] sm:$0xf]
  %v40 = vld [vmem:[%s1 + $0x58] sm:$0xf]
  %v41 = vld [vmem:[%s1 + $0x5c] sm:$0xf]
  %v42 = vld [vmem:[%s1 + $0x60] sm:$0xf]
  %v43 = vld [vmem:[%s1 + $0x64] sm:$0xf]
  %v44 = vld [vmem:[%s1 + $0x68] sm:$0xf]
  %v45 = vld [vmem:[%s1 + $0x6c] sm:$0xf]
  %v46 = vld [vmem:[%s1 + $0x70] sm:$0xf]
  %v47 = vld [vmem:[%s1 + $0x74] sm:$0xf]
  %v48 = vld [vmem:[%s1 + $0x78] sm:$0xf]
  %v49 = vld [vmem:[%s1 + $0x7c] sm:$0xf]
  %v50 = vld [vmem:[%s1 + $0x80] sm:$0xf]
  %v51 = vld [vmem:[%s1 + $0x84] sm:$0xf]
  %v52 = vld [vmem:[%s1 + $0x88] sm:$0xf]
  %v53 = vld [vmem:[%s1 + $0x8c] sm:$0xf]
  %v54 = vld [vmem:[%s1 + $0x90] sm:$0xf]
  %v55 = vld [vmem:[%s1 + $0x94] sm:$0xf]
  %v56 = vld [vmem:[%s1 + $0x98] sm:$0xf]
  %v57 = vld [vmem:[%s1 + $0x9c] sm:$0xf]
  %v58 = vld [vmem:[%s1 + $0xa0] sm:$0xf]
  %v59 = vld [vmem:[%s1 + $0xa4] sm:$0xf]
  %v60 = vld [vmem:[%s1 + $0xa8] sm:$0xf]
  %v61 = vld [vmem:[%s1 + $0xac] sm:$0xf]
  %v62 = vld [vmem:[%s1 + $0xb0] sm:$0xf]
  %v63 = vld [vmem:[%s1 + $0xb4] sm:$0xf]
  %v64 = vld [vmem:[%s1 + $0xb8] sm:$0xf]
  %v65 = vld [vmem:[%s1 + $0xbc] sm:$0xf]
  %v66 = vld [vmem:[%s1 + $0xc0] sm:$0xf]
  %v67 = vld [vmem:[%s1 + $0xc4] sm:$0xf]
  %v68 = vld [vmem:[%s1 + $0xc8] sm:$0xf]
  %v69 = vld [vmem:[%s1 + $0xcc] sm:$0xf]
  %v70 = vld [vmem:[%s1 + $0xd0] sm:$0xf]
  %v71 = vld [vmem:[%s1 + $0xd4] sm:$0xf]
  %v72 = vld [vmem:[%s1 + $0xd8] sm:$0xf]
  %v73 = vld [vmem:[%s1 + $0xdc] sm:$0xf]
  %v74 = vld [vmem:[%s1 + $0xe0] sm:$0xf]
  %v75 = vld [vmem:[%s1 + $0xe4] sm:$0xf]
  %v76 = vld [vmem:[%s1 + $0xe8] sm:$0xf]
  %v77 = vld [vmem:[%s1 + $0xec] sm:$0xf]
  %v78 = vld [vmem:[%s1 + $0xf0] sm:$0xf]
  %v79 = vld [vmem:[%s1 + $0xf4] sm:$0xf]
  %v80 = vld [vmem:[%s1 + $0xf8] sm:$0xf]
  %v81 = vld [vmem:[%s1 + $0xfc] sm:$0xf]
  %v82 = vld [vmem:[%s1 + $0x100] sm:$0xf]
  %v83 = vld [vmem:[%s1 + $0x104] sm:$0xf]
  %v84 = vld [vmem:[%s1 + $0x108] sm:$0xf]
  %v85 = vld [vmem:[%s1 + $0x10c] sm:$0xf]
  %v86 = vld [vmem:[%s1 + $0x110] sm:$0xf]
  %v87 = vld [vmem:[%s1 + $0x114] sm:$0xf]
  %v88 = vld [vmem:[%s1 + $0x118] sm:$0xf]
  %v89 = vld [vmem:[%s1 + $0x11c] sm:$0xf]
  %v90 = vld [vmem:[%s1 + $0x120] sm:$0xf]
  %v91 = vld [vmem:[%s1 + $0x124] sm:$0xf]
  %v92 = vld [vmem:[%s1 + $0x128] sm:$0xf]
  %v93 = vld [vmem:[%s1 + $0x12c] sm:$0xf]
  %v94 = vld [vmem:[%s1 + $0x130] sm:$0xf]
  %v95 = vld [vmem:[%s1 + $0x134] sm:$0xf]
  %v96 = vld [vmem:[%s1 + $0x138] sm:$0xf]
  %v97 = vld [vmem:[%s1 + $0x13c] sm:$0xf]
  %v98 = vld [vmem:[%s2] sm:$0x1]
  %v100 = vlaneseq
  %v101 = vshrl.u32 %v100, 7
  %v102 = vsub.s32 0, %v101
  %v103 = vrot.slane %v98, %v102
  %v108 = vunpack.c.l.b16 %v15
  %v109 = vunpack.c.h.b16 %v15
  %v110 = vunpack.c.l.b16 %v16
  %v111 = vunpack.c.h.b16 %v16
  %v112 = vunpack.c.l.b16 %v17
  %v113 = vpack.c.b16 %v108, %v108
  %v114 = vpack.c.b16 %v109, %v109
  %v115 = vpack.c.b16 %v110, %v110
  %v116 = vpack.c.b16 %v111, %v111
  %v117 = vpack.c.b16 %v112, %v112
  %v203 = vunpack.c.l.b16 %v18
  %v204 = vunpack.c.l.b16 %v19
  %v205 = vunpack.c.l.b16 %v20
  %v206 = vunpack.c.l.b16 %v21
  %v207 = vunpack.c.l.b16 %v22
  %v208 = vunpack.c.l.b16 %v23
  %v209 = vunpack.c.l.b16 %v24
  %v210 = vunpack.c.l.b16 %v25
  %v211 = vunpack.c.l.b16 %v26
  %v212 = vunpack.c.l.b16 %v27
  %v213 = vunpack.c.l.b16 %v28
  %v214 = vunpack.c.l.b16 %v29
  %v215 = vunpack.c.l.b16 %v30
  %v216 = vunpack.c.l.b16 %v31
  %v217 = vunpack.c.l.b16 %v32
  %v218 = vunpack.c.l.b16 %v33
  %v219 = vunpack.c.l.b16 %v34
  %v220 = vunpack.c.l.b16 %v35
  %v221 = vunpack.c.l.b16 %v36
  %v222 = vunpack.c.l.b16 %v37
  %v223 = vunpack.c.l.b16 %v38
  %v224 = vunpack.c.l.b16 %v39
  %v225 = vunpack.c.l.b16 %v40
  %v226 = vunpack.c.l.b16 %v41
  %v227 = vunpack.c.l.b16 %v42
  %v228 = vunpack.c.l.b16 %v43
  %v229 = vunpack.c.l.b16 %v44
  %v230 = vunpack.c.l.b16 %v45
  %v231 = vunpack.c.l.b16 %v46
  %v232 = vunpack.c.l.b16 %v47
  %v233 = vunpack.c.l.b16 %v48
  %v234 = vunpack.c.l.b16 %v49
  %v235 = vunpack.c.l.b16 %v50
  %v236 = vunpack.c.l.b16 %v51
  %v237 = vunpack.c.l.b16 %v52
  %v238 = vunpack.c.l.b16 %v53
  %v239 = vunpack.c.l.b16 %v54
  %v240 = vunpack.c.l.b16 %v55
  %v241 = vunpack.c.l.b16 %v56
  %v242 = vunpack.c.l.b16 %v57
  %v243 = vunpack.c.l.b16 %v58
  %v244 = vunpack.c.l.b16 %v59
  %v245 = vunpack.c.l.b16 %v60
  %v246 = vunpack.c.l.b16 %v61
  %v247 = vunpack.c.l.b16 %v62
  %v248 = vunpack.c.l.b16 %v63
  %v249 = vunpack.c.l.b16 %v64
  %v250 = vunpack.c.l.b16 %v65
  %v251 = vunpack.c.l.b16 %v66
  %v252 = vunpack.c.l.b16 %v67
  %v253 = vunpack.c.l.b16 %v68
  %v254 = vunpack.c.l.b16 %v69
  %v255 = vunpack.c.l.b16 %v70
  %v256 = vunpack.c.l.b16 %v71
  %v257 = vunpack.c.l.b16 %v72
  %v258 = vunpack.c.l.b16 %v73
  %v259 = vunpack.c.l.b16 %v74
  %v260 = vunpack.c.l.b16 %v75
  %v261 = vunpack.c.l.b16 %v76
  %v262 = vunpack.c.l.b16 %v77
  %v263 = vunpack.c.l.b16 %v78
  %v264 = vunpack.c.l.b16 %v79
  %v265 = vunpack.c.l.b16 %v80
  %v266 = vunpack.c.l.b16 %v81
  %v267 = vunpack.c.l.b16 %v82
  %v268 = vunpack.c.l.b16 %v83
  %v269 = vunpack.c.l.b16 %v84
  %v270 = vunpack.c.l.b16 %v85
  %v271 = vunpack.c.l.b16 %v86
  %v272 = vunpack.c.l.b16 %v87
  %v273 = vunpack.c.l.b16 %v88
  %v274 = vunpack.c.l.b16 %v89
  %v275 = vunpack.c.l.b16 %v90
  %v276 = vunpack.c.l.b16 %v91
  %v277 = vunpack.c.l.b16 %v92
  %v278 = vunpack.c.l.b16 %v93
  %v279 = vunpack.c.l.b16 %v94
  %v280 = vunpack.c.l.b16 %v95
  %v281 = vunpack.c.l.b16 %v96
  %v282 = vunpack.c.l.b16 %v97
  %v283 = vpack.c.b16 %v204, %v203
  %v284 = vpack.c.b16 %v206, %v205
  %v285 = vpack.c.b16 %v208, %v207
  %v286 = vpack.c.b16 %v210, %v209
  %v287 = vpack.c.b16 %v212, %v211
  %v288 = vpack.c.b16 %v214, %v213
  %v289 = vpack.c.b16 %v216, %v215
  %v290 = vpack.c.b16 %v218, %v217
  %v291 = vpack.c.b16 %v220, %v219
  %v292 = vpack.c.b16 %v222, %v221
  %v293 = vpack.c.b16 %v224, %v223
  %v294 = vpack.c.b16 %v226, %v225
  %v295 = vpack.c.b16 %v228, %v227
  %v296 = vpack.c.b16 %v230, %v229
  %v297 = vpack.c.b16 %v232, %v231
  %v298 = vpack.c.b16 %v234, %v233
  %v299 = vpack.c.b16 %v236, %v235
  %v300 = vpack.c.b16 %v238, %v237
  %v301 = vpack.c.b16 %v240, %v239
  %v302 = vpack.c.b16 %v242, %v241
  %v303 = vpack.c.b16 %v244, %v243
  %v304 = vpack.c.b16 %v246, %v245
  %v305 = vpack.c.b16 %v248, %v247
  %v306 = vpack.c.b16 %v250, %v249
  %v307 = vpack.c.b16 %v252, %v251
  %v308 = vpack.c.b16 %v254, %v253
  %v309 = vpack.c.b16 %v256, %v255
  %v310 = vpack.c.b16 %v258, %v257
  %v311 = vpack.c.b16 %v260, %v259
  %v312 = vpack.c.b16 %v262, %v261
  %v313 = vpack.c.b16 %v264, %v263
  %v314 = vpack.c.b16 %v266, %v265
  %v315 = vpack.c.b16 %v268, %v267
  %v316 = vpack.c.b16 %v270, %v269
  %v317 = vpack.c.b16 %v272, %v271
  %v318 = vpack.c.b16 %v274, %v273
  %v319 = vpack.c.b16 %v276, %v275
  %v320 = vpack.c.b16 %v278, %v277
  %v321 = vpack.c.b16 %v280, %v279
  %v322 = vpack.c.b16 %v282, %v281
  %363 = vmatprep.subr.bf16.mxu0 0
  %364 = vmatpush1.bf16.msra.mxu0 %v283
  %365 = vmatprep.subr.bf16.mxu0 0
  %366 = vmatpush1.bf16.msra.mxu0 %v284
  %367 = vmatprep.subr.bf16.mxu0 0
  %368 = vmatpush1.bf16.msra.mxu0 %v285
  %369 = vmatprep.subr.bf16.mxu0 0
  %370 = vmatpush1.bf16.msra.mxu0 %v286
  %371 = vmatprep.subr.bf16.mxu0 0
  %372 = vmatpush1.bf16.msra.mxu0 %v287
  %373 = vmatprep.subr.bf16.mxu0 0
  %374 = vmatpush1.bf16.msra.mxu0 %v288
  %375 = vmatprep.subr.bf16.mxu0 0
  %376 = vmatpush1.bf16.msra.mxu0 %v289
  %377 = vmatprep.subr.bf16.mxu0 0
  %378 = vmatpush1.bf16.msra.mxu0 %v290
  %379 = vmatprep.subr.bf16.mxu0 0
  %380 = vmatpush1.bf16.msra.mxu0 %v291
  %381 = vmatprep.subr.bf16.mxu0 0
  %382 = vmatpush1.bf16.msra.mxu0 %v292
  %383 = vmatprep.subr.bf16.mxu0 0
  %384 = vmatpush1.bf16.msra.mxu0 %v293
  %385 = vmatprep.subr.bf16.mxu0 0
  %386 = vmatpush1.bf16.msra.mxu0 %v294
  %387 = vmatprep.subr.bf16.mxu0 0
  %388 = vmatpush1.bf16.msra.mxu0 %v295
  %389 = vmatprep.subr.bf16.mxu0 0
  %390 = vmatpush1.bf16.msra.mxu0 %v296
  %391 = vmatprep.subr.bf16.mxu0 0
  %392 = vmatpush1.bf16.msra.mxu0 %v297
  %393 = vmatprep.subr.bf16.mxu0 0
  %394 = vmatpush1.bf16.msra.mxu0 %v298
  %395 = vmatprep.mubr.bf16.mxu0 %v114
  %396 = vmatmul.mubr.bf16.gmra.mrb[0].mxu0 %v113
  %v397 = vpop.f32.mrb[0].mxu0
  %v398 = vadd.f32 %v103, %v397
  %v399 = vpop.f32.mrb[0].mxu0
  %v400 = vpop.f32.mrb[0].mxu0
  %v401 = vpop.f32.mrb[0].mxu0
  %402 = vdwg.mxu0
  %403 = vmatprep.subr.bf16.mxu0 0
  %404 = vmatpush1.bf16.msra.mxu0 %v299
  %405 = vmatprep.subr.bf16.mxu0 0
  %406 = vmatpush1.bf16.msra.mxu0 %v300
  %407 = vmatprep.subr.bf16.mxu0 0
  %408 = vmatpush1.bf16.msra.mxu0 %v301
  %409 = vmatprep.subr.bf16.mxu0 0
  %410 = vmatpush1.bf16.msra.mxu0 %v302
  %411 = vmatprep.subr.bf16.mxu0 0
  %412 = vmatpush1.bf16.msra.mxu0 %v303
  %413 = vmatprep.subr.bf16.mxu0 0
  %414 = vmatpush1.bf16.msra.mxu0 %v304
  %415 = vmatprep.subr.bf16.mxu0 0
  %416 = vmatpush1.bf16.msra.mxu0 %v305
  %417 = vmatprep.subr.bf16.mxu0 0
  %418 = vmatpush1.bf16.msra.mxu0 %v306
  %419 = vmatprep.subr.bf16.mxu0 0
  %420 = vmatpush1.bf16.msra.mxu0 %v307
  %421 = vmatprep.subr.bf16.mxu0 0
  %422 = vmatpush1.bf16.msra.mxu0 %v308
  %423 = vmatprep.subr.bf16.mxu0 0
  %424 = vmatpush1.bf16.msra.mxu0 %v309
  %425 = vmatprep.subr.bf16.mxu0 0
  %426 = vmatpush1.bf16.msra.mxu0 %v310
  %427 = vmatprep.subr.bf16.mxu0 0
  %428 = vmatpush1.bf16.msra.mxu0 %v311
  %429 = vmatprep.subr.bf16.mxu0 0
  %430 = vmatpush1.bf16.msra.mxu0 %v312
  %431 = vmatprep.subr.bf16.mxu0 0
  %432 = vmatpush1.bf16.msra.mxu0 %v313
  %433 = vmatprep.subr.bf16.mxu0 0
  %434 = vmatpush1.bf16.msra.mxu0 %v314
  %435 = vmatprep.mubr.bf16.mxu0 %v116
  %436 = vmatmul.mubr.bf16.gmra.mrb[0].mxu0 %v115
  %v437 = vpop.f32.mrb[0].mxu0
  %v438 = vadd.f32 %v398, %v437
  %v439 = vpop.f32.mrb[0].mxu0
  %v440 = vpop.f32.mrb[0].mxu0
  %v441 = vpop.f32.mrb[0].mxu0
  %442 = vdwg.mxu0
  %443 = vmatprep.subr.bf16.mxu0 0
  %444 = vmatpush1.bf16.msra.mxu0 %v315
  %445 = vmatprep.subr.bf16.mxu0 0
  %446 = vmatpush1.bf16.msra.mxu0 %v316
  %447 = vmatprep.subr.bf16.mxu0 0
  %448 = vmatpush1.bf16.msra.mxu0 %v317
  %449 = vmatprep.subr.bf16.mxu0 0
  %450 = vmatpush1.bf16.msra.mxu0 %v318
  %451 = vmatprep.subr.bf16.mxu0 0
  %452 = vmatpush1.bf16.msra.mxu0 %v319
  %453 = vmatprep.subr.bf16.mxu0 0
  %454 = vmatpush1.bf16.msra.mxu0 %v320
  %455 = vmatprep.subr.bf16.mxu0 0
  %456 = vmatpush1.bf16.msra.mxu0 %v321
  %457 = vmatprep.subr.bf16.mxu0 0
  %458 = vmatpush1.bf16.msra.mxu0 %v322
  %459 = vmatprep.subr.bf16.mxu0 0
  %460 = vmatpush1.bf16.msra.mxu0 0
  %461 = vmatprep.subr.bf16.mxu0 0
  %462 = vmatpush1.bf16.msra.mxu0 0
  %463 = vmatprep.subr.bf16.mxu0 0
  %464 = vmatpush1.bf16.msra.mxu0 0
  %465 = vmatprep.subr.bf16.mxu0 0
  %466 = vmatpush1.bf16.msra.mxu0 0
  %467 = vmatprep.subr.bf16.mxu0 0
  %468 = vmatpush1.bf16.msra.mxu0 0
  %469 = vmatprep.subr.bf16.mxu0 0
  %470 = vmatpush1.bf16.msra.mxu0 0
  %471 = vmatprep.subr.bf16.mxu0 0
  %472 = vmatpush1.bf16.msra.mxu0 0
  %473 = vmatprep.subr.bf16.mxu0 0
  %474 = vmatpush1.bf16.msra.mxu0 0
  %475 = vmatprep.mubr.bf16.mxu0 0
  %476 = vmatmul.mubr.bf16.gmra.mrb[0].mxu0 %v117
  %v477 = vpop.f32.mrb[0].mxu0
  %v478 = vadd.f32 %v438, %v477
  %v479 = vpop.f32.mrb[0].mxu0
  %v480 = vpop.f32.mrb[0].mxu0
  %v481 = vpop.f32.mrb[0].mxu0
  %482 = vdwg.mxu0
  %vm483 = vcmask 261120
  %484 = vst.msk [vmem:[%s3] sm:$0xff] %vm483, %v478
  // Predicated region
  $region14: #{spatial_frame_features.2} parent=0 // pred_check
    _
  $region15: #{spatial_frame_features.2} parent=0 // pred_check_branch
    %486 = sbr.rel (0) target = $region17
  $region16: #{spatial_frame_features.2} parent=0 // pred_region
    _
  $region17: #{spatial_frame_features.2} parent=0 // pred_fallthru
    _
  // Predicated region
  $region18: #{spatial_frame_features.2} parent=0 // pred_check
    _
  $region19: #{spatial_frame_features.2} parent=0 // pred_check_branch
    %488 = sbr.rel (0) target = $region21
  $region20: #{spatial_frame_features.2} parent=0 // pred_region
    _
  $region21: #{spatial_frame_features.2} parent=0 // pred_fallthru
    _

</llo_original>
